<compile_context>
chip_gen: v5e
topology: v5e:2x2
jax: 0.10.0
libtpu: 0.0.40
codegen_flags: <defaults>
</compile_context>

<pallas_src>
import math

import numpy as np
import jax
import jax.numpy as jnp
from jax import lax
from jax.experimental import pallas as pl
from jax.experimental.pallas import tpu as pltpu

# ----------------------------------------------------------------------------
# Small "bert-base-like" config (scaled down so the script runs fast).
# ----------------------------------------------------------------------------
VOCAB = 100
TYPE_VOCAB = 2
MAX_POS = 16
HIDDEN = 32
NUM_LAYERS = 2
NUM_HEADS = 4
HEAD_DIM = HIDDEN // NUM_HEADS
INTERMEDIATE = 64
SEQ = 8
LN_EPS = 1e-12
QA_PAD = 128                      # lane-dense padded width for the 2-way QA head
INV_SQRT2 = 1.0 / math.sqrt(2.0)


# ----------------------------------------------------------------------------
# One-layer-per-grid-step encoder kernel.
# ----------------------------------------------------------------------------
def _encoder_layer_kernel(
    emb_ref, mask_ref, eln_g_ref, eln_b_ref,
    qkv_w_ref, qkv_b_ref, o_w_ref, o_b_ref, ln1_g_ref, ln1_b_ref,
    fi_w_ref, fi_b_ref, fo_w_ref, fo_b_ref, ln2_g_ref, ln2_b_ref,
    pool_w_ref, pool_b_ref, qa_w_ref, qa_b_ref,
    seq_ref, pooled_ref, logp_ref,
    h_scr,
):
    l = pl.program_id(0)
    bf16 = jnp.bfloat16

    def layernorm(x, g, b):
        # Single-pass reductions: mean and mean-of-squares, var = E[x^2] - mu^2.
        mu = jnp.mean(x, axis=-1, keepdims=True)
        ms = jnp.mean(x * x, axis=-1, keepdims=True)
        return (x - mu) * lax.rsqrt(ms - mu * mu + LN_EPS) * g + b

    # Embedding LayerNorm only on the first grid step; `h` persists in scratch.
    @pl.when(l == 0)
    def _():
        h_scr[...] = layernorm(emb_ref[...], eln_g_ref[...], eln_b_ref[...])

    h = h_scr[...]                                            # [S, H] f32 residual

    # ------------------------- attention (all heads batched) ------------------
    hb = jnp.broadcast_to(h.astype(bf16)[None],
                          (NUM_HEADS, SEQ, HIDDEN))           # [NH, S, H] bf16
    qkv_w = qkv_w_ref[0]                                      # [3*NH, H, HD] bf16
    qkv_b = qkv_b_ref[0]                                      # [3*NH, 1, HD] f32

    def head_proj(w, b):
        # [NH,S,H] @ [NH,H,HD] (batched over heads) -> [NH,S,HD]
        y = jnp.einsum('hsk,hkd->hsd', hb, w,
                       preferred_element_type=jnp.float32)
        return (y + b).astype(bf16)

    q3 = head_proj(qkv_w[0:NUM_HEADS],                 qkv_b[0:NUM_HEADS])
    k3 = head_proj(qkv_w[NUM_HEADS:2 * NUM_HEADS],     qkv_b[NUM_HEADS:2 * NUM_HEADS])
    v3 = head_proj(qkv_w[2 * NUM_HEADS:3 * NUM_HEADS], qkv_b[2 * NUM_HEADS:3 * NUM_HEADS])

    # Scores (Q pre-scaled by 1/sqrt(head_dim) host-side): [NH, S, S]
    s = jnp.einsum('hqd,hkd->hqk', q3, k3, preferred_element_type=jnp.float32)
    s = s + mask_ref[...]                                     # (1,S) additive mask
    s = s - jnp.max(s, axis=-1, keepdims=True)
    p = jnp.exp(s)
    p = p * pl.reciprocal(jnp.sum(p, axis=-1, keepdims=True), approx=True)
    ctx = jnp.einsum('hqk,hkd->hqd', p.astype(bf16), v3,
                     preferred_element_type=jnp.float32)      # [NH, S, HD]

    # Head merge folded into the output projection: batched dot + head-sum.
    proj = jnp.einsum('hsd,hdk->hsk', ctx.astype(bf16), o_w_ref[0],
                      preferred_element_type=jnp.float32)     # [NH, S, H]
    attn_out = jnp.sum(proj, axis=0) + o_b_ref[0]             # [S, H]
    h = layernorm(attn_out + h, ln1_g_ref[0], ln1_b_ref[0])

    # ------------------------------- FFN --------------------------------------
    ffn = (jnp.dot(h.astype(bf16), fi_w_ref[0],
                   preferred_element_type=jnp.float32) + fi_b_ref[0])
    # Exact erf GELU kept on purpose: bert-base-uncased uses 'gelu' (erf), and
    # forward-pass semantics must match the reference.
    ffn = 0.5 * ffn * (1.0 + lax.erf(ffn * INV_SQRT2))
    ffn_out = (jnp.dot(ffn.astype(bf16), fo_w_ref[0],
                       preferred_element_type=jnp.float32) + fo_b_ref[0])
    h = layernorm(ffn_out + h, ln2_g_ref[0], ln2_b_ref[0])

    h_scr[...] = h

    # ------------------------ heads (last layer only) -------------------------
    @pl.when(l == NUM_LAYERS - 1)
    def _():
        seq_ref[...] = h
        pooled_ref[...] = jnp.tanh(
            jnp.dot(h[0:1, :].astype(bf16), pool_w_ref[...],
                    preferred_element_type=jnp.float32) + pool_b_ref[...])
        # Lane-dense padded QA head: [S, H] @ [H, 128]; only cols 0/1 are real.
        logits = (jnp.dot(h.astype(bf16), qa_w_ref[...],
                          preferred_element_type=jnp.float32) + qa_b_ref[...])
        # Log-softmax over the sequence axis (axis 0), per column.
        m = jnp.max(logits, axis=0, keepdims=True)
        z = logits - m
        lse = jnp.log(jnp.sum(jnp.exp(z), axis=0, keepdims=True))
        logp_ref[...] = z - lse


def _const_spec(shape):
    n = len(shape)
    return pl.BlockSpec(tuple(shape), lambda l: (0,) * n)


def _layer_spec(full_shape):
    n = len(full_shape)
    blk = (1,) + tuple(full_shape[1:])
    return pl.BlockSpec(blk, lambda l: (l,) + (0,) * (n - 1))


def encoder_pallas(params, emb, add_mask):
    out_shape = (
        jax.ShapeDtypeStruct((SEQ, HIDDEN), jnp.float32),   # sequence_output
        jax.ShapeDtypeStruct((1, HIDDEN), jnp.float32),     # pooled_output
        jax.ShapeDtypeStruct((SEQ, QA_PAD), jnp.float32),   # padded [start|end|0...] log-probs
    )

    args = (
        emb, add_mask, params["emb_ln_g"], params["emb_ln_b"],
        params["qkv_w"], params["qkv_b"], params["o_w"], params["o_b"],
        params["ln1_g"], params["ln1_b"],
        params["fi_w"], params["fi_b"], params["fo_w"], params["fo_b"],
        params["ln2_g"], params["ln2_b"],
        params["pooler_w"], params["pooler_b"], params["qa_w"], params["qa_b"],
    )
    # args[0:4]  layer-invariant (emb / mask / emb-LN)
    # args[4:16] stacked per-layer weights -> streamed along the layer grid axis
    # args[16:]  layer-invariant heads (pooler / QA)
    in_specs = (
        [_const_spec(a.shape) for a in args[:4]]
        + [_layer_spec(a.shape) for a in args[4:16]]
        + [_const_spec(a.shape) for a in args[16:]]
    )
    out_specs = (
        _const_spec((SEQ, HIDDEN)),
        _const_spec((1, HIDDEN)),
        _const_spec((SEQ, QA_PAD)),
    )

    flops = NUM_LAYERS * (
        2 * 3 * SEQ * HIDDEN * HIDDEN                      # q/k/v projections
        + 2 * 2 * NUM_HEADS * SEQ * SEQ * HEAD_DIM         # scores + context
        + 2 * SEQ * HIDDEN * HIDDEN                        # output projection
        + 2 * 2 * SEQ * HIDDEN * INTERMEDIATE              # FFN in + out
    ) + 2 * HIDDEN * HIDDEN + 2 * SEQ * HIDDEN * QA_PAD    # pooler + QA head
    transcendentals = (NUM_LAYERS * (NUM_HEADS * SEQ * SEQ + SEQ * INTERMEDIATE)
                       + SEQ * QA_PAD + QA_PAD + HIDDEN)
    bytes_accessed = (
        sum(int(np.prod(a.shape)) * a.dtype.itemsize for a in args)
        + sum(int(np.prod(s.shape)) * 4 for s in out_shape)
    )

    fn = pl.pallas_call(
        _encoder_layer_kernel,
        out_shape=out_shape,
        grid_spec=pltpu.PrefetchScalarGridSpec(
            num_scalar_prefetch=0,
            grid=(NUM_LAYERS,),
            in_specs=in_specs,
            out_specs=out_specs,
            scratch_shapes=[pltpu.VMEM((SEQ, HIDDEN), jnp.float32)],
        ),
        compiler_params=pltpu.CompilerParams(
            dimension_semantics=("arbitrary",),          # layer axis carries state
            vmem_limit_bytes=32 * 1024 * 1024,           # explicit budget (v5e/v7x safe)
        ),
        cost_estimate=pl.CostEstimate(
            flops=flops, transcendentals=transcendentals,
            bytes_accessed=bytes_accessed),
    )
    return fn(*args)


# ----------------------------------------------------------------------------
# Deterministic parameter construction (head-major attention weights, bf16
# matmul weights, f32 LN params / biases).
# ----------------------------------------------------------------------------
def init_params(key):
    keys = iter(jax.random.split(key, 64))

    def w(shape, scale=0.02):
        return jax.random.normal(next(keys), shape, jnp.float32) * scale

    zeros = lambda s: jnp.zeros(s, jnp.float32)
    ones = lambda s: jnp.ones(s, jnp.float32)
    bf16 = jnp.bfloat16
    attn_scale = 1.0 / math.sqrt(HEAD_DIM)

    def split_heads_in(m):
        # [H, NH*HD] -> [NH, H, HD]: column block of head h becomes batch h.
        return jnp.transpose(m.reshape(HIDDEN, NUM_HEADS, HEAD_DIM), (1, 0, 2))

    qkv_w, qkv_b, o_w, o_b = [], [], [], []
    ln1_g, ln1_b, ln2_g, ln2_b = [], [], [], []
    fi_w, fi_b, fo_w, fo_b = [], [], [], []
    for _ in range(NUM_LAYERS):
        qw = w((HIDDEN, HIDDEN)) * attn_scale      # fold 1/sqrt(head_dim) into Q
        kw = w((HIDDEN, HIDDEN))
        vw = w((HIDDEN, HIDDEN))
        qkv_w.append(jnp.concatenate(
            [split_heads_in(qw), split_heads_in(kw), split_heads_in(vw)], axis=0))
        qkv_b.append(zeros((3 * NUM_HEADS, 1, HEAD_DIM)))
        ow = w((HIDDEN, HIDDEN))
        o_w.append(ow.reshape(NUM_HEADS, HEAD_DIM, HIDDEN))   # row block h -> batch h
        o_b.append(zeros((1, HIDDEN)))
        ln1_g.append(ones((1, HIDDEN))); ln1_b.append(zeros((1, HIDDEN)))
        fi_w.append(w((HIDDEN, INTERMEDIATE))); fi_b.append(zeros((1, INTERMEDIATE)))
        fo_w.append(w((INTERMEDIATE, HIDDEN))); fo_b.append(zeros((1, HIDDEN)))
        ln2_g.append(ones((1, HIDDEN))); ln2_b.append(zeros((1, HIDDEN)))

    qa_w = jnp.zeros((HIDDEN, QA_PAD), jnp.float32).at[:, :2].set(w((HIDDEN, 2)))

    return {
        "word_emb": w((VOCAB, HIDDEN)),
        "pos_emb": w((MAX_POS, HIDDEN)),
        "type_emb": w((TYPE_VOCAB, HIDDEN)),
        "emb_ln_g": ones((1, HIDDEN)), "emb_ln_b": zeros((1, HIDDEN)),
        "qkv_w": jnp.stack(qkv_w).astype(bf16),   # [L, 3*NH, H, HD]
        "qkv_b": jnp.stack(qkv_b),                # [L, 3*NH, 1, HD]
        "o_w": jnp.stack(o_w).astype(bf16),       # [L, NH, HD, H]
        "o_b": jnp.stack(o_b),
        "ln1_g": jnp.stack(ln1_g), "ln1_b": jnp.stack(ln1_b),
        "fi_w": jnp.stack(fi_w).astype(bf16), "fi_b": jnp.stack(fi_b),
        "fo_w": jnp.stack(fo_w).astype(bf16), "fo_b": jnp.stack(fo_b),
        "ln2_g": jnp.stack(ln2_g), "ln2_b": jnp.stack(ln2_b),
        "pooler_w": w((HIDDEN, HIDDEN)).astype(bf16), "pooler_b": zeros((1, HIDDEN)),
        "qa_w": qa_w.astype(bf16), "qa_b": zeros((1, QA_PAD)),
    }


# ----------------------------------------------------------------------------
# Jitted forward (everything except the reference's host-side torch.nonzero()
# control flow runs on device under one jit).
# ----------------------------------------------------------------------------
@jax.jit
def _forward_jit(params, input_ids, token_type_ids, attention_mask,
                 start_idx, end_idx):
    S = input_ids.shape[-1]
    ids = input_ids[0]
    tok = token_type_ids[0]

    # Embedding gathers (XLA gather glue) feeding the fused Pallas encoder.
    emb = (
        params["word_emb"][ids]
        + params["pos_emb"][jnp.arange(S)]
        + params["type_emb"][tok]
    )
    add_mask = ((1.0 - attention_mask[0].astype(jnp.float32)) * -10000.0
                ).reshape(1, S)

    seq_out, pooled, logp_pad = encoder_pallas(params, emb, add_mask)
    start_logp = logp_pad[:, 0]
    end_logp = logp_pad[:, 1]

    # Reference loss: sum over nonzero-index labels of CE(start/end logits).
    start_loss = -jnp.sum(jnp.take(start_logp, start_idx))
    end_loss = -jnp.sum(jnp.take(end_logp, end_idx))
    loss = (start_loss + end_loss) / 2.0
    return loss, seq_out.reshape(1, S, HIDDEN), pooled


def model_forward(params, input_ids, token_type_ids, attention_mask,
                  start_positions, end_positions):
    # Host-side equivalent of torch.nonzero(...).tolist() — labels are the
    # INDICES of nonzero entries, exactly as in the reference module.
    sp = np.asarray(start_positions)
    ep = np.asarray(end_positions)
    if sp.ndim > 1:
        sp = sp.squeeze(-1)
    if ep.ndim > 1:
        ep = ep.squeeze(-1)
    start_idx = jnp.asarray(np.flatnonzero(sp).astype(np.int32))
    end_idx = jnp.asarray(np.flatnonzero(ep).astype(np.int32))

    loss, seq_out, pooled = _forward_jit(
        params, input_ids, token_type_ids, attention_mask, start_idx, end_idx
    )
    return loss, (seq_out, pooled)


# ----------------------------------------------------------------------------
if __name__ == "__main__":
    key = jax.random.PRNGKey(0)
    pkey, ikey = jax.random.split(key)
    params = init_params(pkey)

    # Batch = 1 (required by the reference loss semantics), seq = 8.
    input_ids = jax.random.randint(ikey, (1, SEQ), 0, VOCAB, dtype=jnp.int32)
    token_type_ids = jnp.zeros((1, SEQ), dtype=jnp.int32)
    attention_mask = jnp.ones((1, SEQ), dtype=jnp.int32)
    start_positions = jnp.array([3], dtype=jnp.int32)
    end_positions = jnp.array([5], dtype=jnp.int32)

    loss, (seq_out, pooled) = model_forward(
        params, input_ids, token_type_ids, attention_mask,
        start_positions, end_positions,
    )
    jax.block_until_ready((loss, seq_out, pooled))

    assert seq_out.shape == (1, SEQ, HIDDEN)
    assert pooled.shape == (1, HIDDEN)
    assert np.isfinite(float(loss))
    print("KERNEL_OK")
</pallas_src>

<mosaic_0001>
module attributes {stable_mosaic.version = 11 : i64} {
  func.func @_encoder_layer_kernel(%arg0: i32, %arg1: memref<8x32xf32, #tpu.memory_space<vmem>>, %arg2: memref<1x8xf32, #tpu.memory_space<vmem>>, %arg3: memref<1x32xf32, #tpu.memory_space<vmem>>, %arg4: memref<1x32xf32, #tpu.memory_space<vmem>>, %arg5: memref<1x12x32x8xbf16, #tpu.memory_space<vmem>>, %arg6: memref<1x12x1x8xf32, #tpu.memory_space<vmem>>, %arg7: memref<1x4x8x32xbf16, #tpu.memory_space<vmem>>, %arg8: memref<1x1x32xf32, #tpu.memory_space<vmem>>, %arg9: memref<1x1x32xf32, #tpu.memory_space<vmem>>, %arg10: memref<1x1x32xf32, #tpu.memory_space<vmem>>, %arg11: memref<1x32x64xbf16, #tpu.memory_space<vmem>>, %arg12: memref<1x1x64xf32, #tpu.memory_space<vmem>>, %arg13: memref<1x64x32xbf16, #tpu.memory_space<vmem>>, %arg14: memref<1x1x32xf32, #tpu.memory_space<vmem>>, %arg15: memref<1x1x32xf32, #tpu.memory_space<vmem>>, %arg16: memref<1x1x32xf32, #tpu.memory_space<vmem>>, %arg17: memref<32x32xbf16, #tpu.memory_space<vmem>>, %arg18: memref<1x32xf32, #tpu.memory_space<vmem>>, %arg19: memref<32x128xbf16, #tpu.memory_space<vmem>>, %arg20: memref<1x128xf32, #tpu.memory_space<vmem>>, %arg21: memref<8x32xf32, #tpu.memory_space<vmem>>, %arg22: memref<1x32xf32, #tpu.memory_space<vmem>>, %arg23: memref<8x128xf32, #tpu.memory_space<vmem>>, %arg24: memref<8x32xf32, #tpu.memory_space<vmem>>) attributes {dimension_semantics = [#tpu.dimension_semantics<arbitrary>], iteration_bounds = array<i64: 2>, scalar_prefetch = 0 : i64, scratch_operands = 1 : i64, tpu.core_type = #tpu.core_type<tc>, window_params = [{pipeline_mode = #tpu.pipeline_mode<synchronous>, transform_indices = @transform_0, window_bounds = array<i64: 8, 32>}, {pipeline_mode = #tpu.pipeline_mode<synchronous>, transform_indices = @transform_1, window_bounds = array<i64: 1, 8>}, {pipeline_mode = #tpu.pipeline_mode<synchronous>, transform_indices = @transform_2, window_bounds = array<i64: 1, 32>}, {pipeline_mode = #tpu.pipeline_mode<synchronous>, transform_indices = @transform_3, window_bounds = array<i64: 1, 32>}, {transform_indices = @transform_4, window_bounds = array<i64: 1, 12, 32, 8>}, {transform_indices = @transform_5, window_bounds = array<i64: 1, 12, 1, 8>}, {transform_indices = @transform_6, window_bounds = array<i64: 1, 4, 8, 32>}, {transform_indices = @transform_7, window_bounds = array<i64: 1, 1, 32>}, {transform_indices = @transform_8, window_bounds = array<i64: 1, 1, 32>}, {transform_indices = @transform_9, window_bounds = array<i64: 1, 1, 32>}, {transform_indices = @transform_10, window_bounds = array<i64: 1, 32, 64>}, {transform_indices = @transform_11, window_bounds = array<i64: 1, 1, 64>}, {transform_indices = @transform_12, window_bounds = array<i64: 1, 64, 32>}, {transform_indices = @transform_13, window_bounds = array<i64: 1, 1, 32>}, {transform_indices = @transform_14, window_bounds = array<i64: 1, 1, 32>}, {transform_indices = @transform_15, window_bounds = array<i64: 1, 1, 32>}, {pipeline_mode = #tpu.pipeline_mode<synchronous>, transform_indices = @transform_16, window_bounds = array<i64: 32, 32>}, {pipeline_mode = #tpu.pipeline_mode<synchronous>, transform_indices = @transform_17, window_bounds = array<i64: 1, 32>}, {pipeline_mode = #tpu.pipeline_mode<synchronous>, transform_indices = @transform_18, window_bounds = array<i64: 32, 128>}, {pipeline_mode = #tpu.pipeline_mode<synchronous>, transform_indices = @transform_19, window_bounds = array<i64: 1, 128>}, {pipeline_mode = #tpu.pipeline_mode<synchronous>, transform_indices = @transform_20, window_bounds = array<i64: 8, 32>}, {pipeline_mode = #tpu.pipeline_mode<synchronous>, transform_indices = @transform_21, window_bounds = array<i64: 1, 32>}, {pipeline_mode = #tpu.pipeline_mode<synchronous>, transform_indices = @transform_22, window_bounds = array<i64: 8, 128>}]} {
    %c0_i32 = arith.constant 0 : i32
    %0 = arith.cmpi eq, %arg0, %c0_i32 : i32
    %1 = arith.extui %0 : i1 to i32
    %c0_i32_0 = arith.constant 0 : i32
    %2 = arith.cmpi ne, %1, %c0_i32_0 : i32
    scf.if %2 {
      %c0_69 = arith.constant 0 : index
      %c0_70 = arith.constant 0 : index
      %138 = vector.load %arg1[%c0_69, %c0_70] : memref<8x32xf32, #tpu.memory_space<vmem>>, vector<8x32xf32>
      %c0_71 = arith.constant 0 : index
      %c0_72 = arith.constant 0 : index
      %139 = vector.load %arg3[%c0_71, %c0_72] : memref<1x32xf32, #tpu.memory_space<vmem>>, vector<1x32xf32>
      %c0_73 = arith.constant 0 : index
      %c0_74 = arith.constant 0 : index
      %140 = vector.load %arg4[%c0_73, %c0_74] : memref<1x32xf32, #tpu.memory_space<vmem>>, vector<1x32xf32>
      %cst_75 = arith.constant dense<0.000000e+00> : vector<8xf32>
      %141 = vector.multi_reduction <add>, %138, %cst_75 [1] : vector<8x32xf32> to vector<8xf32>
      %142 = vector.shape_cast %141 : vector<8xf32> to vector<8x1xf32>
      %cst_76 = arith.constant 3.200000e+01 : f32
      %143 = vector.broadcast %cst_76 : f32 to vector<8x1xf32>
      %144 = arith.divf %142, %143 : vector<8x1xf32>
      %145 = arith.mulf %138, %138 : vector<8x32xf32>
      %cst_77 = arith.constant dense<0.000000e+00> : vector<8xf32>
      %146 = vector.multi_reduction <add>, %145, %cst_77 [1] : vector<8x32xf32> to vector<8xf32>
      %147 = vector.shape_cast %146 : vector<8xf32> to vector<8x1xf32>
      %cst_78 = arith.constant 3.200000e+01 : f32
      %148 = vector.broadcast %cst_78 : f32 to vector<8x1xf32>
      %149 = arith.divf %147, %148 : vector<8x1xf32>
      %150 = vector.broadcast %144 : vector<8x1xf32> to vector<8x32xf32>
      %151 = arith.subf %138, %150 : vector<8x32xf32>
      %152 = arith.mulf %144, %144 : vector<8x1xf32>
      %153 = arith.subf %149, %152 : vector<8x1xf32>
      %cst_79 = arith.constant 9.99999996E-13 : f32
      %154 = vector.broadcast %cst_79 : f32 to vector<8x1xf32>
      %155 = arith.addf %153, %154 : vector<8x1xf32>
      %156 = math.rsqrt %155 : vector<8x1xf32>
      %157 = vector.broadcast %156 : vector<8x1xf32> to vector<8x32xf32>
      %158 = arith.mulf %151, %157 : vector<8x32xf32>
      %159 = vector.broadcast %139 : vector<1x32xf32> to vector<8x32xf32>
      %160 = arith.mulf %158, %159 : vector<8x32xf32>
      %161 = vector.broadcast %140 : vector<1x32xf32> to vector<8x32xf32>
      %162 = arith.addf %160, %161 : vector<8x32xf32>
      %c0_80 = arith.constant 0 : index
      %c0_81 = arith.constant 0 : index
      %163 = vector.load %arg24[%c0_80, %c0_81] : memref<8x32xf32, #tpu.memory_space<vmem>>, vector<8x32xf32>
      tpu.vector_store %arg24[%c0_80, %c0_81], %162 {strides = array<i32>} : memref<8x32xf32, #tpu.memory_space<vmem>>, vector<8x32xf32>,
    } else {
    }
    %c0 = arith.constant 0 : index
    %c0_1 = arith.constant 0 : index
    %3 = vector.load %arg24[%c0, %c0_1] : memref<8x32xf32, #tpu.memory_space<vmem>>, vector<8x32xf32>
    %4 = arith.truncf %3 : vector<8x32xf32> to vector<8x32xbf16>
    %5 = vector.shape_cast %4 : vector<8x32xbf16> to vector<1x8x32xbf16>
    %6 = vector.shape_cast %5 : vector<1x8x32xbf16> to vector<1x8x32xbf16>
    %7 = vector.broadcast %6 : vector<1x8x32xbf16> to vector<4x8x32xbf16>
    %c0_2 = arith.constant 0 : index
    %c0_3 = arith.constant 0 : index
    %c0_4 = arith.constant 0 : index
    %c0_5 = arith.constant 0 : index
    %8 = vector.load %arg5[%c0_2, %c0_3, %c0_4, %c0_5] : memref<1x12x32x8xbf16, #tpu.memory_space<vmem>>, vector<1x12x32x8xbf16>
    %9 = vector.shape_cast %8 : vector<1x12x32x8xbf16> to vector<12x32x8xbf16>
    %c0_6 = arith.constant 0 : index
    %c0_7 = arith.constant 0 : index
    %c0_8 = arith.constant 0 : index
    %c0_9 = arith.constant 0 : index
    %10 = vector.load %arg6[%c0_6, %c0_7, %c0_8, %c0_9] : memref<1x12x1x8xf32, #tpu.memory_space<vmem>>, vector<1x12x1x8xf32>
    %11 = vector.shape_cast %10 : vector<1x12x1x8xf32> to vector<12x1x8xf32>
    %12 = vector.extract_strided_slice %9 {offsets = [0, 0, 0], sizes = [4, 32, 8], strides = [1, 1, 1]} : vector<12x32x8xbf16> to vector<4x32x8xbf16>
    %13 = vector.extract_strided_slice %11 {offsets = [0, 0, 0], sizes = [4, 1, 8], strides = [1, 1, 1]} : vector<12x1x8xf32> to vector<4x1x8xf32>
    "tpu.trace_start"() <{level = 10 : i32, message = "hsk,hkd->hsd"}> : () -> ()
    %cst = arith.constant dense<0.000000e+00> : vector<4x8x8xf32>
    %14 = tpu.matmul %7, %12, %cst {dimension_numbers = #tpu.dot_dimension_numbers<[2], [1], [1], [2], [0, 0, 0, 1, 1, 2], [0], [0]>} : vector<4x8x32xbf16>, vector<4x32x8xbf16>, vector<4x8x8xf32> -> vector<4x8x8xf32>
    "tpu.trace_stop"() : () -> ()
    %15 = vector.broadcast %13 : vector<4x1x8xf32> to vector<4x8x8xf32>
    %16 = arith.addf %14, %15 : vector<4x8x8xf32>
    %17 = arith.truncf %16 : vector<4x8x8xf32> to vector<4x8x8xbf16>
    %18 = vector.extract_strided_slice %9 {offsets = [4, 0, 0], sizes = [4, 32, 8], strides = [1, 1, 1]} : vector<12x32x8xbf16> to vector<4x32x8xbf16>
    %19 = vector.extract_strided_slice %11 {offsets = [4, 0, 0], sizes = [4, 1, 8], strides = [1, 1, 1]} : vector<12x1x8xf32> to vector<4x1x8xf32>
    "tpu.trace_start"() <{level = 10 : i32, message = "hsk,hkd->hsd"}> : () -> ()
    %cst_10 = arith.constant dense<0.000000e+00> : vector<4x8x8xf32>
    %20 = tpu.matmul %7, %18, %cst_10 {dimension_numbers = #tpu.dot_dimension_numbers<[2], [1], [1], [2], [0, 0, 0, 1, 1, 2], [0], [0]>} : vector<4x8x32xbf16>, vector<4x32x8xbf16>, vector<4x8x8xf32> -> vector<4x8x8xf32>
    "tpu.trace_stop"() : () -> ()
    %21 = vector.broadcast %19 : vector<4x1x8xf32> to vector<4x8x8xf32>
    %22 = arith.addf %20, %21 : vector<4x8x8xf32>
    %23 = arith.truncf %22 : vector<4x8x8xf32> to vector<4x8x8xbf16>
    %24 = vector.extract_strided_slice %9 {offsets = [8, 0, 0], sizes = [4, 32, 8], strides = [1, 1, 1]} : vector<12x32x8xbf16> to vector<4x32x8xbf16>
    %25 = vector.extract_strided_slice %11 {offsets = [8, 0, 0], sizes = [4, 1, 8], strides = [1, 1, 1]} : vector<12x1x8xf32> to vector<4x1x8xf32>
    "tpu.trace_start"() <{level = 10 : i32, message = "hsk,hkd->hsd"}> : () -> ()
    %cst_11 = arith.constant dense<0.000000e+00> : vector<4x8x8xf32>
    %26 = tpu.matmul %7, %24, %cst_11 {dimension_numbers = #tpu.dot_dimension_numbers<[2], [1], [1], [2], [0, 0, 0, 1, 1, 2], [0], [0]>} : vector<4x8x32xbf16>, vector<4x32x8xbf16>, vector<4x8x8xf32> -> vector<4x8x8xf32>
    "tpu.trace_stop"() : () -> ()
    %27 = vector.broadcast %25 : vector<4x1x8xf32> to vector<4x8x8xf32>
    %28 = arith.addf %26, %27 : vector<4x8x8xf32>
    %29 = arith.truncf %28 : vector<4x8x8xf32> to vector<4x8x8xbf16>
    "tpu.trace_start"() <{level = 10 : i32, message = "hqd,hkd->hqk"}> : () -> ()
    %cst_12 = arith.constant dense<0.000000e+00> : vector<4x8x8xf32>
    %30 = tpu.matmul %17, %23, %cst_12 {dimension_numbers = #tpu.dot_dimension_numbers<[2], [2], [1], [1], [0, 0, 0, 1, 1, 1], [0], [0]>} : vector<4x8x8xbf16>, vector<4x8x8xbf16>, vector<4x8x8xf32> -> vector<4x8x8xf32>
    "tpu.trace_stop"() : () -> ()
    %c0_13 = arith.constant 0 : index
    %c0_14 = arith.constant 0 : index
    %31 = vector.load %arg2[%c0_13, %c0_14] : memref<1x8xf32, #tpu.memory_space<vmem>>, vector<1x8xf32>
    %32 = vector.shape_cast %31 : vector<1x8xf32> to vector<1x1x8xf32>
    %33 = vector.broadcast %32 : vector<1x1x8xf32> to vector<4x8x8xf32>
    %34 = arith.addf %30, %33 : vector<4x8x8xf32>
    %cst_15 = arith.constant dense<0xFF800000> : vector<4x8xf32>
    %35 = vector.multi_reduction <maximumf>, %34, %cst_15 [2] : vector<4x8x8xf32> to vector<4x8xf32>
    %36 = vector.shape_cast %35 : vector<4x8xf32> to vector<4x8x1xf32>
    %37 = vector.broadcast %36 : vector<4x8x1xf32> to vector<4x8x8xf32>
    %38 = arith.subf %34, %37 : vector<4x8x8xf32>
    %39 = math.exp %38 : vector<4x8x8xf32>
    %cst_16 = arith.constant dense<0.000000e+00> : vector<4x8xf32>
    %40 = vector.multi_reduction <add>, %39, %cst_16 [2] : vector<4x8x8xf32> to vector<4x8xf32>
    %41 = vector.shape_cast %40 : vector<4x8xf32> to vector<4x8x1xf32>
    %42 = tpu.reciprocal %41 {approx = true} : vector<4x8x1xf32> -> vector<4x8x1xf32>
    %43 = vector.broadcast %42 : vector<4x8x1xf32> to vector<4x8x8xf32>
    %44 = arith.mulf %39, %43 : vector<4x8x8xf32>
    %45 = arith.truncf %44 : vector<4x8x8xf32> to vector<4x8x8xbf16>
    "tpu.trace_start"() <{level = 10 : i32, message = "hqk,hkd->hqd"}> : () -> ()
    %cst_17 = arith.constant dense<0.000000e+00> : vector<4x8x8xf32>
    %46 = tpu.matmul %45, %29, %cst_17 {dimension_numbers = #tpu.dot_dimension_numbers<[2], [1], [1], [2], [0, 0, 0, 1, 1, 2], [0], [0]>} : vector<4x8x8xbf16>, vector<4x8x8xbf16>, vector<4x8x8xf32> -> vector<4x8x8xf32>
    "tpu.trace_stop"() : () -> ()
    %47 = arith.truncf %46 : vector<4x8x8xf32> to vector<4x8x8xbf16>
    %c0_18 = arith.constant 0 : index
    %c0_19 = arith.constant 0 : index
    %c0_20 = arith.constant 0 : index
    %c0_21 = arith.constant 0 : index
    %48 = vector.load %arg7[%c0_18, %c0_19, %c0_20, %c0_21] : memref<1x4x8x32xbf16, #tpu.memory_space<vmem>>, vector<1x4x8x32xbf16>
    %49 = vector.shape_cast %48 : vector<1x4x8x32xbf16> to vector<4x8x32xbf16>
    "tpu.trace_start"() <{level = 10 : i32, message = "hsd,hdk->hsk"}> : () -> ()
    %cst_22 = arith.constant dense<0.000000e+00> : vector<4x8x32xf32>
    %50 = tpu.matmul %47, %49, %cst_22 {dimension_numbers = #tpu.dot_dimension_numbers<[2], [1], [1], [2], [0, 0, 0, 1, 1, 2], [0], [0]>} : vector<4x8x8xbf16>, vector<4x8x32xbf16>, vector<4x8x32xf32> -> vector<4x8x32xf32>
    "tpu.trace_stop"() : () -> ()
    %cst_23 = arith.constant dense<0.000000e+00> : vector<8x32xf32>
    %51 = vector.multi_reduction <add>, %50, %cst_23 [0] : vector<4x8x32xf32> to vector<8x32xf32>
    %c0_24 = arith.constant 0 : index
    %c0_25 = arith.constant 0 : index
    %c0_26 = arith.constant 0 : index
    %52 = vector.load %arg8[%c0_24, %c0_25, %c0_26] : memref<1x1x32xf32, #tpu.memory_space<vmem>>, vector<1x1x32xf32>
    %53 = vector.shape_cast %52 : vector<1x1x32xf32> to vector<1x32xf32>
    %54 = vector.broadcast %53 : vector<1x32xf32> to vector<8x32xf32>
    %55 = arith.addf %51, %54 : vector<8x32xf32>
    %56 = arith.addf %55, %3 : vector<8x32xf32>
    %c0_27 = arith.constant 0 : index
    %c0_28 = arith.constant 0 : index
    %c0_29 = arith.constant 0 : index
    %57 = vector.load %arg9[%c0_27, %c0_28, %c0_29] : memref<1x1x32xf32, #tpu.memory_space<vmem>>, vector<1x1x32xf32>
    %58 = vector.shape_cast %57 : vector<1x1x32xf32> to vector<1x32xf32>
    %c0_30 = arith.constant 0 : index
    %c0_31 = arith.constant 0 : index
    %c0_32 = arith.constant 0 : index
    %59 = vector.load %arg10[%c0_30, %c0_31, %c0_32] : memref<1x1x32xf32, #tpu.memory_space<vmem>>, vector<1x1x32xf32>
    %60 = vector.shape_cast %59 : vector<1x1x32xf32> to vector<1x32xf32>
    %cst_33 = arith.constant dense<0.000000e+00> : vector<8xf32>
    %61 = vector.multi_reduction <add>, %56, %cst_33 [1] : vector<8x32xf32> to vector<8xf32>
    %62 = vector.shape_cast %61 : vector<8xf32> to vector<8x1xf32>
    %cst_34 = arith.constant 3.200000e+01 : f32
    %63 = vector.broadcast %cst_34 : f32 to vector<8x1xf32>
    %64 = arith.divf %62, %63 : vector<8x1xf32>
    %65 = arith.mulf %56, %56 : vector<8x32xf32>
    %cst_35 = arith.constant dense<0.000000e+00> : vector<8xf32>
    %66 = vector.multi_reduction <add>, %65, %cst_35 [1] : vector<8x32xf32> to vector<8xf32>
    %67 = vector.shape_cast %66 : vector<8xf32> to vector<8x1xf32>
    %cst_36 = arith.constant 3.200000e+01 : f32
    %68 = vector.broadcast %cst_36 : f32 to vector<8x1xf32>
    %69 = arith.divf %67, %68 : vector<8x1xf32>
    %70 = vector.broadcast %64 : vector<8x1xf32> to vector<8x32xf32>
    %71 = arith.subf %56, %70 : vector<8x32xf32>
    %72 = arith.mulf %64, %64 : vector<8x1xf32>
    %73 = arith.subf %69, %72 : vector<8x1xf32>
    %cst_37 = arith.constant 9.99999996E-13 : f32
    %74 = vector.broadcast %cst_37 : f32 to vector<8x1xf32>
    %75 = arith.addf %73, %74 : vector<8x1xf32>
    %76 = math.rsqrt %75 : vector<8x1xf32>
    %77 = vector.broadcast %76 : vector<8x1xf32> to vector<8x32xf32>
    %78 = arith.mulf %71, %77 : vector<8x32xf32>
    %79 = vector.broadcast %58 : vector<1x32xf32> to vector<8x32xf32>
    %80 = arith.mulf %78, %79 : vector<8x32xf32>
    %81 = vector.broadcast %60 : vector<1x32xf32> to vector<8x32xf32>
    %82 = arith.addf %80, %81 : vector<8x32xf32>
    %83 = arith.truncf %82 : vector<8x32xf32> to vector<8x32xbf16>
    %c0_38 = arith.constant 0 : index
    %c0_39 = arith.constant 0 : index
    %c0_40 = arith.constant 0 : index
    %84 = vector.load %arg11[%c0_38, %c0_39, %c0_40] : memref<1x32x64xbf16, #tpu.memory_space<vmem>>, vector<1x32x64xbf16>
    %85 = vector.shape_cast %84 : vector<1x32x64xbf16> to vector<32x64xbf16>
    %cst_41 = arith.constant dense<0.000000e+00> : vector<8x64xf32>
    %86 = tpu.matmul %83, %85, %cst_41 {dimension_numbers = #tpu.dot_dimension_numbers<[1], [0], [0], [1], [0, 0, 1, 1], [], []>} : vector<8x32xbf16>, vector<32x64xbf16>, vector<8x64xf32> -> vector<8x64xf32>
    %c0_42 = arith.constant 0 : index
    %c0_43 = arith.constant 0 : index
    %c0_44 = arith.constant 0 : index
    %87 = vector.load %arg12[%c0_42, %c0_43, %c0_44] : memref<1x1x64xf32, #tpu.memory_space<vmem>>, vector<1x1x64xf32>
    %88 = vector.shape_cast %87 : vector<1x1x64xf32> to vector<1x64xf32>
    %89 = vector.broadcast %88 : vector<1x64xf32> to vector<8x64xf32>
    %90 = arith.addf %86, %89 : vector<8x64xf32>
    %cst_45 = arith.constant 5.000000e-01 : f32
    %91 = vector.broadcast %cst_45 : f32 to vector<8x64xf32>
    %92 = arith.mulf %91, %90 : vector<8x64xf32>
    %cst_46 = arith.constant 0.707106769 : f32
    %93 = vector.broadcast %cst_46 : f32 to vector<8x64xf32>
    %94 = arith.mulf %90, %93 : vector<8x64xf32>
    %95 = math.erf %94 : vector<8x64xf32>
    %cst_47 = arith.constant 1.000000e+00 : f32
    %96 = vector.broadcast %cst_47 : f32 to vector<8x64xf32>
    %97 = arith.addf %96, %95 : vector<8x64xf32>
    %98 = arith.mulf %92, %97 : vector<8x64xf32>
    %99 = arith.truncf %98 : vector<8x64xf32> to vector<8x64xbf16>
    %c0_48 = arith.constant 0 : index
    %c0_49 = arith.constant 0 : index
    %c0_50 = arith.constant 0 : index
    %100 = vector.load %arg13[%c0_48, %c0_49, %c0_50] : memref<1x64x32xbf16, #tpu.memory_space<vmem>>, vector<1x64x32xbf16>
    %101 = vector.shape_cast %100 : vector<1x64x32xbf16> to vector<64x32xbf16>
    %cst_51 = arith.constant dense<0.000000e+00> : vector<8x32xf32>
    %102 = tpu.matmul %99, %101, %cst_51 {dimension_numbers = #tpu.dot_dimension_numbers<[1], [0], [0], [1], [0, 0, 1, 1], [], []>} : vector<8x64xbf16>, vector<64x32xbf16>, vector<8x32xf32> -> vector<8x32xf32>
    %c0_52 = arith.constant 0 : index
    %c0_53 = arith.constant 0 : index
    %c0_54 = arith.constant 0 : index
    %103 = vector.load %arg14[%c0_52, %c0_53, %c0_54] : memref<1x1x32xf32, #tpu.memory_space<vmem>>, vector<1x1x32xf32>
    %104 = vector.shape_cast %103 : vector<1x1x32xf32> to vector<1x32xf32>
    %105 = vector.broadcast %104 : vector<1x32xf32> to vector<8x32xf32>
    %106 = arith.addf %102, %105 : vector<8x32xf32>
    %107 = arith.addf %106, %82 : vector<8x32xf32>
    %c0_55 = arith.constant 0 : index
    %c0_56 = arith.constant 0 : index
    %c0_57 = arith.constant 0 : index
    %108 = vector.load %arg15[%c0_55, %c0_56, %c0_57] : memref<1x1x32xf32, #tpu.memory_space<vmem>>, vector<1x1x32xf32>
    %109 = vector.shape_cast %108 : vector<1x1x32xf32> to vector<1x32xf32>
    %c0_58 = arith.constant 0 : index
    %c0_59 = arith.constant 0 : index
    %c0_60 = arith.constant 0 : index
    %110 = vector.load %arg16[%c0_58, %c0_59, %c0_60] : memref<1x1x32xf32, #tpu.memory_space<vmem>>, vector<1x1x32xf32>
    %111 = vector.shape_cast %110 : vector<1x1x32xf32> to vector<1x32xf32>
    %cst_61 = arith.constant dense<0.000000e+00> : vector<8xf32>
    %112 = vector.multi_reduction <add>, %107, %cst_61 [1] : vector<8x32xf32> to vector<8xf32>
    %113 = vector.shape_cast %112 : vector<8xf32> to vector<8x1xf32>
    %cst_62 = arith.constant 3.200000e+01 : f32
    %114 = vector.broadcast %cst_62 : f32 to vector<8x1xf32>
    %115 = arith.divf %113, %114 : vector<8x1xf32>
    %116 = arith.mulf %107, %107 : vector<8x32xf32>
    %cst_63 = arith.constant dense<0.000000e+00> : vector<8xf32>
    %117 = vector.multi_reduction <add>, %116, %cst_63 [1] : vector<8x32xf32> to vector<8xf32>
    %118 = vector.shape_cast %117 : vector<8xf32> to vector<8x1xf32>
    %cst_64 = arith.constant 3.200000e+01 : f32
    %119 = vector.broadcast %cst_64 : f32 to vector<8x1xf32>
    %120 = arith.divf %118, %119 : vector<8x1xf32>
    %121 = vector.broadcast %115 : vector<8x1xf32> to vector<8x32xf32>
    %122 = arith.subf %107, %121 : vector<8x32xf32>
    %123 = arith.mulf %115, %115 : vector<8x1xf32>
    %124 = arith.subf %120, %123 : vector<8x1xf32>
    %cst_65 = arith.constant 9.99999996E-13 : f32
    %125 = vector.broadcast %cst_65 : f32 to vector<8x1xf32>
    %126 = arith.addf %124, %125 : vector<8x1xf32>
    %127 = math.rsqrt %126 : vector<8x1xf32>
    %128 = vector.broadcast %127 : vector<8x1xf32> to vector<8x32xf32>
    %129 = arith.mulf %122, %128 : vector<8x32xf32>
    %130 = vector.broadcast %109 : vector<1x32xf32> to vector<8x32xf32>
    %131 = arith.mulf %129, %130 : vector<8x32xf32>
    %132 = vector.broadcast %111 : vector<1x32xf32> to vector<8x32xf32>
    %133 = arith.addf %131, %132 : vector<8x32xf32>
    %c0_66 = arith.constant 0 : index
    %c0_67 = arith.constant 0 : index
    %134 = vector.load %arg24[%c0_66, %c0_67] : memref<8x32xf32, #tpu.memory_space<vmem>>, vector<8x32xf32>
    tpu.vector_store %arg24[%c0_66, %c0_67], %133 {strides = array<i32>} : memref<8x32xf32, #tpu.memory_space<vmem>>, vector<8x32xf32>,
    %c1_i32 = arith.constant 1 : i32
    %135 = arith.cmpi eq, %arg0, %c1_i32 : i32
    %136 = arith.extui %135 : i1 to i32
    %c0_i32_68 = arith.constant 0 : i32
    %137 = arith.cmpi ne, %136, %c0_i32_68 : i32
    scf.if %137 {
      %c0_69 = arith.constant 0 : index
      %c0_70 = arith.constant 0 : index
      %138 = vector.load %arg21[%c0_69, %c0_70] : memref<8x32xf32, #tpu.memory_space<vmem>>, vector<8x32xf32>
      tpu.vector_store %arg21[%c0_69, %c0_70], %133 {strides = array<i32>} : memref<8x32xf32, #tpu.memory_space<vmem>>, vector<8x32xf32>,
      %139 = vector.extract_strided_slice %133 {offsets = [0, 0], sizes = [1, 32], strides = [1, 1]} : vector<8x32xf32> to vector<1x32xf32>
      %140 = arith.truncf %139 : vector<1x32xf32> to vector<1x32xbf16>
      %c0_71 = arith.constant 0 : index
      %c0_72 = arith.constant 0 : index
      %141 = vector.load %arg17[%c0_71, %c0_72] : memref<32x32xbf16, #tpu.memory_space<vmem>>, vector<32x32xbf16>
      %cst_73 = arith.constant dense<0.000000e+00> : vector<1x32xf32>
      %142 = tpu.matmul %140, %141, %cst_73 {dimension_numbers = #tpu.dot_dimension_numbers<[1], [0], [0], [1], [0, 0, 1, 1], [], []>} : vector<1x32xbf16>, vector<32x32xbf16>, vector<1x32xf32> -> vector<1x32xf32>
      %c0_74 = arith.constant 0 : index
      %c0_75 = arith.constant 0 : index
      %143 = vector.load %arg18[%c0_74, %c0_75] : memref<1x32xf32, #tpu.memory_space<vmem>>, vector<1x32xf32>
      %144 = arith.addf %142, %143 : vector<1x32xf32>
      %145 = math.tanh %144 : vector<1x32xf32>
      %c0_76 = arith.constant 0 : index
      %c0_77 = arith.constant 0 : index
      %146 = vector.load %arg22[%c0_76, %c0_77] : memref<1x32xf32, #tpu.memory_space<vmem>>, vector<1x32xf32>
      tpu.vector_store %arg22[%c0_76, %c0_77], %145 {strides = array<i32>} : memref<1x32xf32, #tpu.memory_space<vmem>>, vector<1x32xf32>,
      %147 = arith.truncf %133 : vector<8x32xf32> to vector<8x32xbf16>
      %c0_78 = arith.constant 0 : index
      %c0_79 = arith.constant 0 : index
      %148 = vector.load %arg19[%c0_78, %c0_79] : memref<32x128xbf16, #tpu.memory_space<vmem>>, vector<32x128xbf16>
      %cst_80 = arith.constant dense<0.000000e+00> : vector<8x128xf32>
      %149 = tpu.matmul %147, %148, %cst_80 {dimension_numbers = #tpu.dot_dimension_numbers<[1], [0], [0], [1], [0, 0, 1, 1], [], []>} : vector<8x32xbf16>, vector<32x128xbf16>, vector<8x128xf32> -> vector<8x128xf32>
      %c0_81 = arith.constant 0 : index
      %c0_82 = arith.constant 0 : index
      %150 = vector.load %arg20[%c0_81, %c0_82] : memref<1x128xf32, #tpu.memory_space<vmem>>, vector<1x128xf32>
      %151 = vector.broadcast %150 : vector<1x128xf32> to vector<8x128xf32>
      %152 = arith.addf %149, %151 : vector<8x128xf32>
      %cst_83 = arith.constant dense<0xFF800000> : vector<128xf32>
      %153 = vector.multi_reduction <maximumf>, %152, %cst_83 [0] : vector<8x128xf32> to vector<128xf32>
      %154 = vector.shape_cast %153 : vector<128xf32> to vector<1x128xf32>
      %155 = vector.broadcast %154 : vector<1x128xf32> to vector<8x128xf32>
      %156 = arith.subf %152, %155 : vector<8x128xf32>
      %157 = math.exp %156 : vector<8x128xf32>
      %cst_84 = arith.constant dense<0.000000e+00> : vector<128xf32>
      %158 = vector.multi_reduction <add>, %157, %cst_84 [0] : vector<8x128xf32> to vector<128xf32>
      %159 = vector.shape_cast %158 : vector<128xf32> to vector<1x128xf32>
      %160 = math.log %159 : vector<1x128xf32>
      %161 = vector.broadcast %160 : vector<1x128xf32> to vector<8x128xf32>
      %162 = arith.subf %156, %161 : vector<8x128xf32>
      %c0_85 = arith.constant 0 : index
      %c0_86 = arith.constant 0 : index
      %163 = vector.load %arg23[%c0_85, %c0_86] : memref<8x128xf32, #tpu.memory_space<vmem>>, vector<8x128xf32>
      tpu.vector_store %arg23[%c0_85, %c0_86], %162 {strides = array<i32>} : memref<8x128xf32, #tpu.memory_space<vmem>>, vector<8x128xf32>,
    } else {
    }
    return
  }
  func.func @transform_0(%arg0: i32) -> (i32, i32) {
    %c0_i32 = arith.constant 0 : i32
    %c0_i32_0 = arith.constant 0 : i32
    %c0_i32_1 = arith.constant 0 : i32
    return %c0_i32, %c0_i32_0 : i32, i32
  }
  func.func @transform_1(%arg0: i32) -> (i32, i32) {
    %c0_i32 = arith.constant 0 : i32
    %c0_i32_0 = arith.constant 0 : i32
    %c0_i32_1 = arith.constant 0 : i32
    return %c0_i32, %c0_i32_0 : i32, i32
  }
  func.func @transform_2(%arg0: i32) -> (i32, i32) {
    %c0_i32 = arith.constant 0 : i32
    %c0_i32_0 = arith.constant 0 : i32
    %c0_i32_1 = arith.constant 0 : i32
    return %c0_i32, %c0_i32_0 : i32, i32
  }
  func.func @transform_3(%arg0: i32) -> (i32, i32) {
    %c0_i32 = arith.constant 0 : i32
    %c0_i32_0 = arith.constant 0 : i32
    %c0_i32_1 = arith.constant 0 : i32
    return %c0_i32, %c0_i32_0 : i32, i32
  }
  func.func @transform_4(%arg0: i32) -> (i32, i32, i32, i32) {
    %c0_i32 = arith.constant 0 : i32
    %c0_i32_0 = arith.constant 0 : i32
    %c0_i32_1 = arith.constant 0 : i32
    %c0_i32_2 = arith.constant 0 : i32
    return %arg0, %c0_i32, %c0_i32_0, %c0_i32_1 : i32, i32, i32, i32
  }
  func.func @transform_5(%arg0: i32) -> (i32, i32, i32, i32) {
    %c0_i32 = arith.constant 0 : i32
    %c0_i32_0 = arith.constant 0 : i32
    %c0_i32_1 = arith.constant 0 : i32
    %c0_i32_2 = arith.constant 0 : i32
    return %arg0, %c0_i32, %c0_i32_0, %c0_i32_1 : i32, i32, i32, i32
  }
  func.func @transform_6(%arg0: i32) -> (i32, i32, i32, i32) {
    %c0_i32 = arith.constant 0 : i32
    %c0_i32_0 = arith.constant 0 : i32
    %c0_i32_1 = arith.constant 0 : i32
    %c0_i32_2 = arith.constant 0 : i32
    return %arg0, %c0_i32, %c0_i32_0, %c0_i32_1 : i32, i32, i32, i32
  }
  func.func @transform_7(%arg0: i32) -> (i32, i32, i32) {
    %c0_i32 = arith.constant 0 : i32
    %c0_i32_0 = arith.constant 0 : i32
    %c0_i32_1 = arith.constant 0 : i32
    return %arg0, %c0_i32, %c0_i32_0 : i32, i32, i32
  }
  func.func @transform_8(%arg0: i32) -> (i32, i32, i32) {
    %c0_i32 = arith.constant 0 : i32
    %c0_i32_0 = arith.constant 0 : i32
    %c0_i32_1 = arith.constant 0 : i32
    return %arg0, %c0_i32, %c0_i32_0 : i32, i32, i32
  }
  func.func @transform_9(%arg0: i32) -> (i32, i32, i32) {
    %c0_i32 = arith.constant 0 : i32
    %c0_i32_0 = arith.constant 0 : i32
    %c0_i32_1 = arith.constant 0 : i32
    return %arg0, %c0_i32, %c0_i32_0 : i32, i32, i32
  }
  func.func @transform_10(%arg0: i32) -> (i32, i32, i32) {
    %c0_i32 = arith.constant 0 : i32
    %c0_i32_0 = arith.constant 0 : i32
    %c0_i32_1 = arith.constant 0 : i32
    return %arg0, %c0_i32, %c0_i32_0 : i32, i32, i32
  }
  func.func @transform_11(%arg0: i32) -> (i32, i32, i32) {
    %c0_i32 = arith.constant 0 : i32
    %c0_i32_0 = arith.constant 0 : i32
    %c0_i32_1 = arith.constant 0 : i32
    return %arg0, %c0_i32, %c0_i32_0 : i32, i32, i32
  }
  func.func @transform_12(%arg0: i32) -> (i32, i32, i32) {
    %c0_i32 = arith.constant 0 : i32
    %c0_i32_0 = arith.constant 0 : i32
    %c0_i32_1 = arith.constant 0 : i32
    return %arg0, %c0_i32, %c0_i32_0 : i32, i32, i32
  }
  func.func @transform_13(%arg0: i32) -> (i32, i32, i32) {
    %c0_i32 = arith.constant 0 : i32
    %c0_i32_0 = arith.constant 0 : i32
    %c0_i32_1 = arith.constant 0 : i32
    return %arg0, %c0_i32, %c0_i32_0 : i32, i32, i32
  }
  func.func @transform_14(%arg0: i32) -> (i32, i32, i32) {
    %c0_i32 = arith.constant 0 : i32
    %c0_i32_0 = arith.constant 0 : i32
    %c0_i32_1 = arith.constant 0 : i32
    return %arg0, %c0_i32, %c0_i32_0 : i32, i32, i32
  }
  func.func @transform_15(%arg0: i32) -> (i32, i32, i32) {
    %c0_i32 = arith.constant 0 : i32
    %c0_i32_0 = arith.constant 0 : i32
    %c0_i32_1 = arith.constant 0 : i32
    return %arg0, %c0_i32, %c0_i32_0 : i32, i32, i32
  }
  func.func @transform_16(%arg0: i32) -> (i32, i32) {
    %c0_i32 = arith.constant 0 : i32
    %c0_i32_0 = arith.constant 0 : i32
    %c0_i32_1 = arith.constant 0 : i32
    return %c0_i32, %c0_i32_0 : i32, i32
  }
  func.func @transform_17(%arg0: i32) -> (i32, i32) {
    %c0_i32 = arith.constant 0 : i32
    %c0_i32_0 = arith.constant 0 : i32
    %c0_i32_1 = arith.constant 0 : i32
    return %c0_i32, %c0_i32_0 : i32, i32
  }
  func.func @transform_18(%arg0: i32) -> (i32, i32) {
    %c0_i32 = arith.constant 0 : i32
    %c0_i32_0 = arith.constant 0 : i32
    %c0_i32_1 = arith.constant 0 : i32
    return %c0_i32, %c0_i32_0 : i32, i32
  }
  func.func @transform_19(%arg0: i32) -> (i32, i32) {
    %c0_i32 = arith.constant 0 : i32
    %c0_i32_0 = arith.constant 0 : i32
    %c0_i32_1 = arith.constant 0 : i32
    return %c0_i32, %c0_i32_0 : i32, i32
  }
  func.func @transform_20(%arg0: i32) -> (i32, i32) {
    %c0_i32 = arith.constant 0 : i32
    %c0_i32_0 = arith.constant 0 : i32
    %c0_i32_1 = arith.constant 0 : i32
    return %c0_i32, %c0_i32_0 : i32, i32
  }
  func.func @transform_21(%arg0: i32) -> (i32, i32) {
    %c0_i32 = arith.constant 0 : i32
    %c0_i32_0 = arith.constant 0 : i32
    %c0_i32_1 = arith.constant 0 : i32
    return %c0_i32, %c0_i32_0 : i32, i32
  }
  func.func @transform_22(%arg0: i32) -> (i32, i32) {
    %c0_i32 = arith.constant 0 : i32
    %c0_i32_0 = arith.constant 0 : i32
    %c0_i32_1 = arith.constant 0 : i32
    return %c0_i32, %c0_i32_0 : i32, i32
  }
}

</mosaic_0001>

<llo_original>
// kernel: _forward_jit.1
$region0: #{_forward_jit.1}
  #allocation0 [shape = 'u32[]', space=smem, size = 0x4, offset = 0x4, fixed_abs, tag = 'smem constant byte address 0x4 - core index']
  #allocation1 [shape = 'u32[72,128]{1,0:T(1,128)}', space=vmem, size = 0x9000, scoped, tag = 'internal scratch']
  #allocation2 [shape = 'f32[8,32]{1,0:T(8,128)}', space=vmem, size = 0x1000, scoped, tag = 'scratch operand']
  %s0 = inlined_call_operand.vmem [shape: f32[8,32], index: 0, kind: input, shape index: {}]
  %s1 = inlined_call_operand.vmem [shape: f32[1,8], index: 1, kind: input, shape index: {}]
  %s2 = inlined_call_operand.vmem [shape: f32[1,32], index: 2, kind: input, shape index: {}]
  %s3 = inlined_call_operand.vmem [shape: f32[1,32], index: 3, kind: input, shape index: {}]
  %s4 = inlined_call_operand.vmem [shape: bf16[2,12,32,8], index: 4, kind: input, shape index: {}]
  %s5 = inlined_call_operand.vmem [shape: f32[2,12,1,8], index: 5, kind: input, shape index: {}]
  %s6 = inlined_call_operand.vmem [shape: bf16[2,4,8,32], index: 6, kind: input, shape index: {}]
  %s7 = inlined_call_operand.vmem [shape: f32[2,1,32], index: 7, kind: input, shape index: {}]
  %s8 = inlined_call_operand.vmem [shape: f32[2,1,32], index: 8, kind: input, shape index: {}]
  %s9 = inlined_call_operand.vmem [shape: f32[2,1,32], index: 9, kind: input, shape index: {}]
  %s10 = inlined_call_operand.vmem [shape: bf16[2,32,64], index: 10, kind: input, shape index: {}]
  %s11 = inlined_call_operand.vmem [shape: f32[2,1,64], index: 11, kind: input, shape index: {}]
  %s12 = inlined_call_operand.vmem [shape: bf16[2,64,32], index: 12, kind: input, shape index: {}]
  %s13 = inlined_call_operand.vmem [shape: f32[2,1,32], index: 13, kind: input, shape index: {}]
  %s14 = inlined_call_operand.vmem [shape: f32[2,1,32], index: 14, kind: input, shape index: {}]
  %s15 = inlined_call_operand.vmem [shape: f32[2,1,32], index: 15, kind: input, shape index: {}]
  %s16 = inlined_call_operand.vmem [shape: bf16[32,32], index: 16, kind: input, shape index: {}]
  %s17 = inlined_call_operand.vmem [shape: f32[1,32], index: 17, kind: input, shape index: {}]
  %s18 = inlined_call_operand.vmem [shape: bf16[32,128], index: 18, kind: input, shape index: {}]
  %s19 = inlined_call_operand.vmem [shape: f32[1,128], index: 19, kind: input, shape index: {}]
  %s20 = inlined_call_operand.hbm [shape: f32[8,32], index: 20, kind: output, shape index: {0}]
  %s21 = inlined_call_operand.hbm [shape: f32[1,32], index: 21, kind: output, shape index: {1}]
  %s22 = inlined_call_operand.vmem [shape: f32[8,128], index: 22, kind: output, shape index: {2}]
  %23 = xla_tuple %s20, %s21, %s22
  %s24 = sld [smem:[#allocation0]]
  $region137: #{_forward_jit.1} parent=0
    _
  %s26 = ssub.s32 1, %s24
  %s27 = scalar_select 0, %s26, %s24
  $region1: #{_forward_jit.1} parent=0
    #allocation3 [shape = 'u8[4096]{0}', space=vmem, size = 0x1000, scoped, tag = 'output window, operand 0, single buffered']
    #allocation4 [shape = 's32[2]{0}', space=sflag, size = 0x8, scoped, tag = 'scoped memory for _forward_jit.1']
    #allocation5 [shape = 'u8[512]{0}', space=vmem, size = 0x400, scoped, tag = 'output window, operand 1, single buffered']
    #allocation6 [shape = 's32[1]{0}', space=sflag, size = 0x4, scoped, tag = 'scoped memory for _forward_jit.1']
    %28 = vsyncpa [#allocation4], 0
    %29 = vsyncpa [#allocation6], 0
    loop: start=0, step=1, limit=4
    $region2: #{_forward_jit.1} parent=1 // loop_pre_header
      _
    $region3: #{_forward_jit.1} parent=1 // loop_header
      %s31 = sphi 0, %s35
      %p32 = scmp.ge.s32.totalorder %s31, 4
      %s39 = sphi 0, %s39
      %s41 = sphi 0, %s39
      %s42 = sphi 0, %s41
      %s56 = sphi 0, %s42
      %s60 = sphi 0, %s60
      %s62 = sphi 0, %s60
      %s63 = sphi 0, %s62
      %s77 = sphi 0, %s63
      %s81 = sphi 0, %s81
      %s83 = sphi 0, %s81
      %s84 = sphi 0, %s83
      %s98 = sphi 0, %s84
      %s102 = sphi 0, %s102
      %s104 = sphi 0, %s102
      %s105 = sphi 0, %s104
      %s119 = sphi 0, %s105
      %s125 = sphi 0, %s127
      %s128 = sphi 0, %s125
      %s129 = sphi 0, %s128
      %s145 = sphi 0, %s129
      %s151 = sphi 0, %s153
      %s154 = sphi 0, %s151
      %s155 = sphi 0, %s154
      %s171 = sphi 0, %s155
      %s177 = sphi 0, %s179
      %s180 = sphi 0, %s177
      %s181 = sphi 0, %s180
      %s197 = sphi 0, %s181
      %s203 = sphi 0, %s205
      %s206 = sphi 0, %s203
      %s207 = sphi 0, %s206
      %s223 = sphi 0, %s207
      %s229 = sphi 0, %s231
      %s232 = sphi 0, %s229
      %s233 = sphi 0, %s232
      %s249 = sphi 0, %s233
      %s255 = sphi 0, %s257
      %s258 = sphi 0, %s255
      %s259 = sphi 0, %s258
      %s275 = sphi 0, %s259
      %s281 = sphi 0, %s283
      %s284 = sphi 0, %s281
      %s285 = sphi 0, %s284
      %s301 = sphi 0, %s285
      %s307 = sphi 0, %s309
      %s310 = sphi 0, %s307
      %s311 = sphi 0, %s310
      %s327 = sphi 0, %s311
      %s333 = sphi 0, %s335
      %s336 = sphi 0, %s333
      %s337 = sphi 0, %s336
      %s353 = sphi 0, %s337
      %s359 = sphi 0, %s361
      %s362 = sphi 0, %s359
      %s363 = sphi 0, %s362
      %s379 = sphi 0, %s363
      %s385 = sphi 0, %s387
      %s388 = sphi 0, %s385
      %s389 = sphi 0, %s388
      %s405 = sphi 0, %s389
      %s411 = sphi 0, %s413
      %s414 = sphi 0, %s411
      %s415 = sphi 0, %s414
      %s431 = sphi 0, %s415
      %s435 = sphi 0, %s435
      %s437 = sphi 0, %s435
      %s438 = sphi 0, %s437
      %s452 = sphi 0, %s438
      %s456 = sphi 0, %s456
      %s458 = sphi 0, %s456
      %s459 = sphi 0, %s458
      %s473 = sphi 0, %s459
      %s477 = sphi 0, %s477
      %s479 = sphi 0, %s477
      %s480 = sphi 0, %s479
      %s494 = sphi 0, %s480
      %s498 = sphi 0, %s498
      %s500 = sphi 0, %s498
      %s501 = sphi 0, %s500
      %s515 = sphi 0, %s501
      %s519 = sphi 0, %s519
      %s521 = sphi 0, %s519
      %s522 = sphi 0, %s521
      %s536 = sphi 0, %s522
      %s540 = sphi 0, %s540
      %s542 = sphi 0, %s540
      %s543 = sphi 0, %s542
      %s557 = sphi 0, %s543
      %s561 = sphi 0, %s561
      %s563 = sphi 0, %s561
      %s564 = sphi 0, %s563
      %s578 = sphi 0, %s564
    $region4: #{_forward_jit.1} parent=1 // loop_header_branch
      %34 = sbr.rel (%p32) target = $region8
    $region5: #{_forward_jit.1} parent=1 // loop_body
      %s36 = ssub.s32 %s31, 1
      %s37 = ssub.s32 %s31, 2
      %s38 = sadd.s32 %s31, 1
      %s40 = sadd.s32 %s39, 1
      %p43 = scmp.eq.s32.totalorder %s31, 1
      %p44 = scmp.ne.s32.totalorder %s39, %s41
      %p45 = scmp.eq.s32.totalorder %s31, 0
      %p46 = por %p44, %p45
      %p47 = scmp.ne.s32.totalorder %s39, %s41
      %p48 = scmp.eq.s32.totalorder %s36, 1
      %p49 = por %p47, %p48
      %p50 = scmp.ne.s32.totalorder %s41, %s42
      %p51 = scmp.eq.s32.totalorder %s36, 0
      %p52 = por %p50, %p51
      %p53 = scmp.ne.s32.totalorder %s41, %s42
      %p54 = scmp.eq.s32.totalorder %s37, 1
      %p55 = por %p53, %p54
      %p57 = scmp.ne.s32.totalorder %s42, %s56
      %p58 = scmp.eq.s32.totalorder %s37, 0
      %p59 = por %p57, %p58
      %s61 = sadd.s32 %s60, 1
      %p64 = scmp.eq.s32.totalorder %s31, 1
      %p65 = scmp.ne.s32.totalorder %s60, %s62
      %p66 = scmp.eq.s32.totalorder %s31, 0
      %p67 = por %p65, %p66
      %p68 = scmp.ne.s32.totalorder %s60, %s62
      %p69 = scmp.eq.s32.totalorder %s36, 1
      %p70 = por %p68, %p69
      %p71 = scmp.ne.s32.totalorder %s62, %s63
      %p72 = scmp.eq.s32.totalorder %s36, 0
      %p73 = por %p71, %p72
      %p74 = scmp.ne.s32.totalorder %s62, %s63
      %p75 = scmp.eq.s32.totalorder %s37, 1
      %p76 = por %p74, %p75
      %p78 = scmp.ne.s32.totalorder %s63, %s77
      %p79 = scmp.eq.s32.totalorder %s37, 0
      %p80 = por %p78, %p79
      %s82 = sadd.s32 %s81, 1
      %p85 = scmp.eq.s32.totalorder %s31, 1
      %p86 = scmp.ne.s32.totalorder %s81, %s83
      %p87 = scmp.eq.s32.totalorder %s31, 0
      %p88 = por %p86, %p87
      %p89 = scmp.ne.s32.totalorder %s81, %s83
      %p90 = scmp.eq.s32.totalorder %s36, 1
      %p91 = por %p89, %p90
      %p92 = scmp.ne.s32.totalorder %s83, %s84
      %p93 = scmp.eq.s32.totalorder %s36, 0
      %p94 = por %p92, %p93
      %p95 = scmp.ne.s32.totalorder %s83, %s84
      %p96 = scmp.eq.s32.totalorder %s37, 1
      %p97 = por %p95, %p96
      %p99 = scmp.ne.s32.totalorder %s84, %s98
      %p100 = scmp.eq.s32.totalorder %s37, 0
      %p101 = por %p99, %p100
      %s103 = sadd.s32 %s102, 1
      %p106 = scmp.eq.s32.totalorder %s31, 1
      %p107 = scmp.ne.s32.totalorder %s102, %s104
      %p108 = scmp.eq.s32.totalorder %s31, 0
      %p109 = por %p107, %p108
      %p110 = scmp.ne.s32.totalorder %s102, %s104
      %p111 = scmp.eq.s32.totalorder %s36, 1
      %p112 = por %p110, %p111
      %p113 = scmp.ne.s32.totalorder %s104, %s105
      %p114 = scmp.eq.s32.totalorder %s36, 0
      %p115 = por %p113, %p114
      %p116 = scmp.ne.s32.totalorder %s104, %s105
      %p117 = scmp.eq.s32.totalorder %s37, 1
      %p118 = por %p116, %p117
      %p120 = scmp.ne.s32.totalorder %s105, %s119
      %p121 = scmp.eq.s32.totalorder %s37, 0
      %p122 = por %p120, %p121
      %s123 = ssub.s32 %s31, %s38
      %p124 = scmp.eq.s32.totalorder %s123, 0
      %s126 = sadd.s32 %s125, 1
      %s127 = scalar_select %p124, %s125, %s126
      %p130 = pneg %p124
      %p131 = scmp.eq.s32.totalorder %s31, 1
      %p132 = por %p130, %p131
      %p133 = scmp.ne.s32.totalorder %s125, %s128
      %p134 = scmp.eq.s32.totalorder %s31, 0
      %p135 = por %p133, %p134
      %p136 = scmp.ne.s32.totalorder %s125, %s128
      %p137 = scmp.eq.s32.totalorder %s36, 1
      %p138 = por %p136, %p137
      %p139 = scmp.ne.s32.totalorder %s128, %s129
      %p140 = scmp.eq.s32.totalorder %s36, 0
      %p141 = por %p139, %p140
      %p142 = scmp.ne.s32.totalorder %s128, %s129
      %p143 = scmp.eq.s32.totalorder %s37, 1
      %p144 = por %p142, %p143
      %p146 = scmp.ne.s32.totalorder %s129, %s145
      %p147 = scmp.eq.s32.totalorder %s37, 0
      %p148 = por %p146, %p147
      %s149 = ssub.s32 %s31, %s38
      %p150 = scmp.eq.s32.totalorder %s149, 0
      %s152 = sadd.s32 %s151, 1
      %s153 = scalar_select %p150, %s151, %s152
      %p156 = pneg %p150
      %p157 = scmp.eq.s32.totalorder %s31, 1
      %p158 = por %p156, %p157
      %p159 = scmp.ne.s32.totalorder %s151, %s154
      %p160 = scmp.eq.s32.totalorder %s31, 0
      %p161 = por %p159, %p160
      %p162 = scmp.ne.s32.totalorder %s151, %s154
      %p163 = scmp.eq.s32.totalorder %s36, 1
      %p164 = por %p162, %p163
      %p165 = scmp.ne.s32.totalorder %s154, %s155
      %p166 = scmp.eq.s32.totalorder %s36, 0
      %p167 = por %p165, %p166
      %p168 = scmp.ne.s32.totalorder %s154, %s155
      %p169 = scmp.eq.s32.totalorder %s37, 1
      %p170 = por %p168, %p169
      %p172 = scmp.ne.s32.totalorder %s155, %s171
      %p173 = scmp.eq.s32.totalorder %s37, 0
      %p174 = por %p172, %p173
      %s175 = ssub.s32 %s31, %s38
      %p176 = scmp.eq.s32.totalorder %s175, 0
      %s178 = sadd.s32 %s177, 1
      %s179 = scalar_select %p176, %s177, %s178
      %p182 = pneg %p176
      %p183 = scmp.eq.s32.totalorder %s31, 1
      %p184 = por %p182, %p183
      %p185 = scmp.ne.s32.totalorder %s177, %s180
      %p186 = scmp.eq.s32.totalorder %s31, 0
      %p187 = por %p185, %p186
      %p188 = scmp.ne.s32.totalorder %s177, %s180
      %p189 = scmp.eq.s32.totalorder %s36, 1
      %p190 = por %p188, %p189
      %p191 = scmp.ne.s32.totalorder %s180, %s181
      %p192 = scmp.eq.s32.totalorder %s36, 0
      %p193 = por %p191, %p192
      %p194 = scmp.ne.s32.totalorder %s180, %s181
      %p195 = scmp.eq.s32.totalorder %s37, 1
      %p196 = por %p194, %p195
      %p198 = scmp.ne.s32.totalorder %s181, %s197
      %p199 = scmp.eq.s32.totalorder %s37, 0
      %p200 = por %p198, %p199
      %s201 = ssub.s32 %s31, %s38
      %p202 = scmp.eq.s32.totalorder %s201, 0
      %s204 = sadd.s32 %s203, 1
      %s205 = scalar_select %p202, %s203, %s204
      %p208 = pneg %p202
      %p209 = scmp.eq.s32.totalorder %s31, 1
      %p210 = por %p208, %p209
      %p211 = scmp.ne.s32.totalorder %s203, %s206
      %p212 = scmp.eq.s32.totalorder %s31, 0
      %p213 = por %p211, %p212
      %p214 = scmp.ne.s32.totalorder %s203, %s206
      %p215 = scmp.eq.s32.totalorder %s36, 1
      %p216 = por %p214, %p215
      %p217 = scmp.ne.s32.totalorder %s206, %s207
      %p218 = scmp.eq.s32.totalorder %s36, 0
      %p219 = por %p217, %p218
      %p220 = scmp.ne.s32.totalorder %s206, %s207
      %p221 = scmp.eq.s32.totalorder %s37, 1
      %p222 = por %p220, %p221
      %p224 = scmp.ne.s32.totalorder %s207, %s223
      %p225 = scmp.eq.s32.totalorder %s37, 0
      %p226 = por %p224, %p225
      %s227 = ssub.s32 %s31, %s38
      %p228 = scmp.eq.s32.totalorder %s227, 0
      %s230 = sadd.s32 %s229, 1
      %s231 = scalar_select %p228, %s229, %s230
      %p234 = pneg %p228
      %p235 = scmp.eq.s32.totalorder %s31, 1
      %p236 = por %p234, %p235
      %p237 = scmp.ne.s32.totalorder %s229, %s232
      %p238 = scmp.eq.s32.totalorder %s31, 0
      %p239 = por %p237, %p238
      %p240 = scmp.ne.s32.totalorder %s229, %s232
      %p241 = scmp.eq.s32.totalorder %s36, 1
      %p242 = por %p240, %p241
      %p243 = scmp.ne.s32.totalorder %s232, %s233
      %p244 = scmp.eq.s32.totalorder %s36, 0
      %p245 = por %p243, %p244
      %p246 = scmp.ne.s32.totalorder %s232, %s233
      %p247 = scmp.eq.s32.totalorder %s37, 1
      %p248 = por %p246, %p247
      %p250 = scmp.ne.s32.totalorder %s233, %s249
      %p251 = scmp.eq.s32.totalorder %s37, 0
      %p252 = por %p250, %p251
      %s253 = ssub.s32 %s31, %s38
      %p254 = scmp.eq.s32.totalorder %s253, 0
      %s256 = sadd.s32 %s255, 1
      %s257 = scalar_select %p254, %s255, %s256
      %p260 = pneg %p254
      %p261 = scmp.eq.s32.totalorder %s31, 1
      %p262 = por %p260, %p261
      %p263 = scmp.ne.s32.totalorder %s255, %s258
      %p264 = scmp.eq.s32.totalorder %s31, 0
      %p265 = por %p263, %p264
      %p266 = scmp.ne.s32.totalorder %s255, %s258
      %p267 = scmp.eq.s32.totalorder %s36, 1
      %p268 = por %p266, %p267
      %p269 = scmp.ne.s32.totalorder %s258, %s259
      %p270 = scmp.eq.s32.totalorder %s36, 0
      %p271 = por %p269, %p270
      %p272 = scmp.ne.s32.totalorder %s258, %s259
      %p273 = scmp.eq.s32.totalorder %s37, 1
      %p274 = por %p272, %p273
      %p276 = scmp.ne.s32.totalorder %s259, %s275
      %p277 = scmp.eq.s32.totalorder %s37, 0
      %p278 = por %p276, %p277
      %s279 = ssub.s32 %s31, %s38
      %p280 = scmp.eq.s32.totalorder %s279, 0
      %s282 = sadd.s32 %s281, 1
      %s283 = scalar_select %p280, %s281, %s282
      %p286 = pneg %p280
      %p287 = scmp.eq.s32.totalorder %s31, 1
      %p288 = por %p286, %p287
      %p289 = scmp.ne.s32.totalorder %s281, %s284
      %p290 = scmp.eq.s32.totalorder %s31, 0
      %p291 = por %p289, %p290
      %p292 = scmp.ne.s32.totalorder %s281, %s284
      %p293 = scmp.eq.s32.totalorder %s36, 1
      %p294 = por %p292, %p293
      %p295 = scmp.ne.s32.totalorder %s284, %s285
      %p296 = scmp.eq.s32.totalorder %s36, 0
      %p297 = por %p295, %p296
      %p298 = scmp.ne.s32.totalorder %s284, %s285
      %p299 = scmp.eq.s32.totalorder %s37, 1
      %p300 = por %p298, %p299
      %p302 = scmp.ne.s32.totalorder %s285, %s301
      %p303 = scmp.eq.s32.totalorder %s37, 0
      %p304 = por %p302, %p303
      %s305 = ssub.s32 %s31, %s38
      %p306 = scmp.eq.s32.totalorder %s305, 0
      %s308 = sadd.s32 %s307, 1
      %s309 = scalar_select %p306, %s307, %s308
      %p312 = pneg %p306
      %p313 = scmp.eq.s32.totalorder %s31, 1
      %p314 = por %p312, %p313
      %p315 = scmp.ne.s32.totalorder %s307, %s310
      %p316 = scmp.eq.s32.totalorder %s31, 0
      %p317 = por %p315, %p316
      %p318 = scmp.ne.s32.totalorder %s307, %s310
      %p319 = scmp.eq.s32.totalorder %s36, 1
      %p320 = por %p318, %p319
      %p321 = scmp.ne.s32.totalorder %s310, %s311
      %p322 = scmp.eq.s32.totalorder %s36, 0
      %p323 = por %p321, %p322
      %p324 = scmp.ne.s32.totalorder %s310, %s311
      %p325 = scmp.eq.s32.totalorder %s37, 1
      %p326 = por %p324, %p325
      %p328 = scmp.ne.s32.totalorder %s311, %s327
      %p329 = scmp.eq.s32.totalorder %s37, 0
      %p330 = por %p328, %p329
      %s331 = ssub.s32 %s31, %s38
      %p332 = scmp.eq.s32.totalorder %s331, 0
      %s334 = sadd.s32 %s333, 1
      %s335 = scalar_select %p332, %s333, %s334
      %p338 = pneg %p332
      %p339 = scmp.eq.s32.totalorder %s31, 1
      %p340 = por %p338, %p339
      %p341 = scmp.ne.s32.totalorder %s333, %s336
      %p342 = scmp.eq.s32.totalorder %s31, 0
      %p343 = por %p341, %p342
      %p344 = scmp.ne.s32.totalorder %s333, %s336
      %p345 = scmp.eq.s32.totalorder %s36, 1
      %p346 = por %p344, %p345
      %p347 = scmp.ne.s32.totalorder %s336, %s337
      %p348 = scmp.eq.s32.totalorder %s36, 0
      %p349 = por %p347, %p348
      %p350 = scmp.ne.s32.totalorder %s336, %s337
      %p351 = scmp.eq.s32.totalorder %s37, 1
      %p352 = por %p350, %p351
      %p354 = scmp.ne.s32.totalorder %s337, %s353
      %p355 = scmp.eq.s32.totalorder %s37, 0
      %p356 = por %p354, %p355
      %s357 = ssub.s32 %s31, %s38
      %p358 = scmp.eq.s32.totalorder %s357, 0
      %s360 = sadd.s32 %s359, 1
      %s361 = scalar_select %p358, %s359, %s360
      %p364 = pneg %p358
      %p365 = scmp.eq.s32.totalorder %s31, 1
      %p366 = por %p364, %p365
      %p367 = scmp.ne.s32.totalorder %s359, %s362
      %p368 = scmp.eq.s32.totalorder %s31, 0
      %p369 = por %p367, %p368
      %p370 = scmp.ne.s32.totalorder %s359, %s362
      %p371 = scmp.eq.s32.totalorder %s36, 1
      %p372 = por %p370, %p371
      %p373 = scmp.ne.s32.totalorder %s362, %s363
      %p374 = scmp.eq.s32.totalorder %s36, 0
      %p375 = por %p373, %p374
      %p376 = scmp.ne.s32.totalorder %s362, %s363
      %p377 = scmp.eq.s32.totalorder %s37, 1
      %p378 = por %p376, %p377
      %p380 = scmp.ne.s32.totalorder %s363, %s379
      %p381 = scmp.eq.s32.totalorder %s37, 0
      %p382 = por %p380, %p381
      %s383 = ssub.s32 %s31, %s38
      %p384 = scmp.eq.s32.totalorder %s383, 0
      %s386 = sadd.s32 %s385, 1
      %s387 = scalar_select %p384, %s385, %s386
      %p390 = pneg %p384
      %p391 = scmp.eq.s32.totalorder %s31, 1
      %p392 = por %p390, %p391
      %p393 = scmp.ne.s32.totalorder %s385, %s388
      %p394 = scmp.eq.s32.totalorder %s31, 0
      %p395 = por %p393, %p394
      %p396 = scmp.ne.s32.totalorder %s385, %s388
      %p397 = scmp.eq.s32.totalorder %s36, 1
      %p398 = por %p396, %p397
      %p399 = scmp.ne.s32.totalorder %s388, %s389
      %p400 = scmp.eq.s32.totalorder %s36, 0
      %p401 = por %p399, %p400
      %p402 = scmp.ne.s32.totalorder %s388, %s389
      %p403 = scmp.eq.s32.totalorder %s37, 1
      %p404 = por %p402, %p403
      %p406 = scmp.ne.s32.totalorder %s389, %s405
      %p407 = scmp.eq.s32.totalorder %s37, 0
      %p408 = por %p406, %p407
      %s409 = ssub.s32 %s31, %s38
      %p410 = scmp.eq.s32.totalorder %s409, 0
      %s412 = sadd.s32 %s411, 1
      %s413 = scalar_select %p410, %s411, %s412
      %p416 = pneg %p410
      %p417 = scmp.eq.s32.totalorder %s31, 1
      %p418 = por %p416, %p417
      %p419 = scmp.ne.s32.totalorder %s411, %s414
      %p420 = scmp.eq.s32.totalorder %s31, 0
      %p421 = por %p419, %p420
      %p422 = scmp.ne.s32.totalorder %s411, %s414
      %p423 = scmp.eq.s32.totalorder %s36, 1
      %p424 = por %p422, %p423
      %p425 = scmp.ne.s32.totalorder %s414, %s415
      %p426 = scmp.eq.s32.totalorder %s36, 0
      %p427 = por %p425, %p426
      %p428 = scmp.ne.s32.totalorder %s414, %s415
      %p429 = scmp.eq.s32.totalorder %s37, 1
      %p430 = por %p428, %p429
      %p432 = scmp.ne.s32.totalorder %s415, %s431
      %p433 = scmp.eq.s32.totalorder %s37, 0
      %p434 = por %p432, %p433
      %s436 = sadd.s32 %s435, 1
      %p439 = scmp.eq.s32.totalorder %s31, 1
      %p440 = scmp.ne.s32.totalorder %s435, %s437
      %p441 = scmp.eq.s32.totalorder %s31, 0
      %p442 = por %p440, %p441
      %p443 = scmp.ne.s32.totalorder %s435, %s437
      %p444 = scmp.eq.s32.totalorder %s36, 1
      %p445 = por %p443, %p444
      %p446 = scmp.ne.s32.totalorder %s437, %s438
      %p447 = scmp.eq.s32.totalorder %s36, 0
      %p448 = por %p446, %p447
      %p449 = scmp.ne.s32.totalorder %s437, %s438
      %p450 = scmp.eq.s32.totalorder %s37, 1
      %p451 = por %p449, %p450
      %p453 = scmp.ne.s32.totalorder %s438, %s452
      %p454 = scmp.eq.s32.totalorder %s37, 0
      %p455 = por %p453, %p454
      %s457 = sadd.s32 %s456, 1
      %p460 = scmp.eq.s32.totalorder %s31, 1
      %p461 = scmp.ne.s32.totalorder %s456, %s458
      %p462 = scmp.eq.s32.totalorder %s31, 0
      %p463 = por %p461, %p462
      %p464 = scmp.ne.s32.totalorder %s456, %s458
      %p465 = scmp.eq.s32.totalorder %s36, 1
      %p466 = por %p464, %p465
      %p467 = scmp.ne.s32.totalorder %s458, %s459
      %p468 = scmp.eq.s32.totalorder %s36, 0
      %p469 = por %p467, %p468
      %p470 = scmp.ne.s32.totalorder %s458, %s459
      %p471 = scmp.eq.s32.totalorder %s37, 1
      %p472 = por %p470, %p471
      %p474 = scmp.ne.s32.totalorder %s459, %s473
      %p475 = scmp.eq.s32.totalorder %s37, 0
      %p476 = por %p474, %p475
      %s478 = sadd.s32 %s477, 1
      %p481 = scmp.eq.s32.totalorder %s31, 1
      %p482 = scmp.ne.s32.totalorder %s477, %s479
      %p483 = scmp.eq.s32.totalorder %s31, 0
      %p484 = por %p482, %p483
      %p485 = scmp.ne.s32.totalorder %s477, %s479
      %p486 = scmp.eq.s32.totalorder %s36, 1
      %p487 = por %p485, %p486
      %p488 = scmp.ne.s32.totalorder %s479, %s480
      %p489 = scmp.eq.s32.totalorder %s36, 0
      %p490 = por %p488, %p489
      %p491 = scmp.ne.s32.totalorder %s479, %s480
      %p492 = scmp.eq.s32.totalorder %s37, 1
      %p493 = por %p491, %p492
      %p495 = scmp.ne.s32.totalorder %s480, %s494
      %p496 = scmp.eq.s32.totalorder %s37, 0
      %p497 = por %p495, %p496
      %s499 = sadd.s32 %s498, 1
      %p502 = scmp.eq.s32.totalorder %s31, 1
      %p503 = scmp.ne.s32.totalorder %s498, %s500
      %p504 = scmp.eq.s32.totalorder %s31, 0
      %p505 = por %p503, %p504
      %p506 = scmp.ne.s32.totalorder %s498, %s500
      %p507 = scmp.eq.s32.totalorder %s36, 1
      %p508 = por %p506, %p507
      %p509 = scmp.ne.s32.totalorder %s500, %s501
      %p510 = scmp.eq.s32.totalorder %s36, 0
      %p511 = por %p509, %p510
      %p512 = scmp.ne.s32.totalorder %s500, %s501
      %p513 = scmp.eq.s32.totalorder %s37, 1
      %p514 = por %p512, %p513
      %p516 = scmp.ne.s32.totalorder %s501, %s515
      %p517 = scmp.eq.s32.totalorder %s37, 0
      %p518 = por %p516, %p517
      %s520 = sadd.s32 %s519, 1
      %p523 = scmp.eq.s32.totalorder %s31, 1
      %p524 = scmp.ne.s32.totalorder %s519, %s521
      %p525 = scmp.eq.s32.totalorder %s31, 0
      %p526 = por %p524, %p525
      %p527 = scmp.ne.s32.totalorder %s519, %s521
      %p528 = scmp.eq.s32.totalorder %s36, 1
      %p529 = por %p527, %p528
      %p530 = scmp.ne.s32.totalorder %s521, %s522
      %p531 = scmp.eq.s32.totalorder %s36, 0
      %p532 = por %p530, %p531
      %p533 = scmp.ne.s32.totalorder %s521, %s522
      %p534 = scmp.eq.s32.totalorder %s37, 1
      %p535 = por %p533, %p534
      %p537 = scmp.ne.s32.totalorder %s522, %s536
      %p538 = scmp.eq.s32.totalorder %s37, 0
      %p539 = por %p537, %p538
      %s541 = sadd.s32 %s540, 1
      %p544 = scmp.eq.s32.totalorder %s31, 1
      %p545 = scmp.ne.s32.totalorder %s540, %s542
      %p546 = scmp.eq.s32.totalorder %s31, 0
      %p547 = por %p545, %p546
      %p548 = scmp.ne.s32.totalorder %s540, %s542
      %p549 = scmp.eq.s32.totalorder %s36, 1
      %p550 = por %p548, %p549
      %p551 = scmp.ne.s32.totalorder %s542, %s543
      %p552 = scmp.eq.s32.totalorder %s36, 0
      %p553 = por %p551, %p552
      %p554 = scmp.ne.s32.totalorder %s542, %s543
      %p555 = scmp.eq.s32.totalorder %s37, 1
      %p556 = por %p554, %p555
      %p558 = scmp.ne.s32.totalorder %s543, %s557
      %p559 = scmp.eq.s32.totalorder %s37, 0
      %p560 = por %p558, %p559
      %s562 = sadd.s32 %s561, 1
      %p565 = scmp.eq.s32.totalorder %s31, 1
      %p566 = scmp.ne.s32.totalorder %s561, %s563
      %p567 = scmp.eq.s32.totalorder %s31, 0
      %p568 = por %p566, %p567
      %p569 = scmp.ne.s32.totalorder %s561, %s563
      %p570 = scmp.eq.s32.totalorder %s36, 1
      %p571 = por %p569, %p570
      %p572 = scmp.ne.s32.totalorder %s563, %s564
      %p573 = scmp.eq.s32.totalorder %s36, 0
      %p574 = por %p572, %p573
      %p575 = scmp.ne.s32.totalorder %s563, %s564
      %p576 = scmp.eq.s32.totalorder %s37, 1
      %p577 = por %p575, %p576
      %p579 = scmp.ne.s32.totalorder %s564, %s578
      %p580 = scmp.eq.s32.totalorder %s37, 0
      %p581 = por %p579, %p580
      %p582 = scmp.le.s32.totalorder 1, %s31
      %p583 = scmp.lt.s32.totalorder %s31, 3
      %p584 = pnand %p582, %p583
      %p585 = pneg %p584
      // Predicated region
      $region9: #{_forward_jit.1} parent=5 // pred_check
        _
      $region10: #{_forward_jit.1} parent=5 // pred_check_branch
        %587 = sbr.rel (%p584) target = $region12
      $region11: #{_forward_jit.1} parent=5 // pred_region
        %s588 = ssub.s32 %s31, 1
        // Predicated region
        $region13: #{_forward_jit.1} parent=11 // pred_check
          %p589 = pneg %p52
        $region14: #{_forward_jit.1} parent=11 // pred_check_branch
          %591 = sbr.rel (%p589) target = $region16
        $region15: #{_forward_jit.1} parent=11 // pred_region
          _
        $region16: #{_forward_jit.1} parent=11 // pred_fallthru
          _
        // Predicated region
        $region17: #{_forward_jit.1} parent=11 // pred_check
          %p592 = pneg %p73
        $region18: #{_forward_jit.1} parent=11 // pred_check_branch
          %594 = sbr.rel (%p592) target = $region20
        $region19: #{_forward_jit.1} parent=11 // pred_region
          _
        $region20: #{_forward_jit.1} parent=11 // pred_fallthru
          _
        // Predicated region
        $region21: #{_forward_jit.1} parent=11 // pred_check
          %p595 = pneg %p94
        $region22: #{_forward_jit.1} parent=11 // pred_check_branch
          %597 = sbr.rel (%p595) target = $region24
        $region23: #{_forward_jit.1} parent=11 // pred_region
          _
        $region24: #{_forward_jit.1} parent=11 // pred_fallthru
          _
        // Predicated region
        $region25: #{_forward_jit.1} parent=11 // pred_check
          %p598 = pneg %p115
        $region26: #{_forward_jit.1} parent=11 // pred_check_branch
          %600 = sbr.rel (%p598) target = $region28
        $region27: #{_forward_jit.1} parent=11 // pred_region
          _
        $region28: #{_forward_jit.1} parent=11 // pred_fallthru
          _
        // Predicated region
        $region29: #{_forward_jit.1} parent=11 // pred_check
          %p601 = pneg %p448
        $region30: #{_forward_jit.1} parent=11 // pred_check_branch
          %603 = sbr.rel (%p601) target = $region32
        $region31: #{_forward_jit.1} parent=11 // pred_region
          _
        $region32: #{_forward_jit.1} parent=11 // pred_fallthru
          _
        // Predicated region
        $region33: #{_forward_jit.1} parent=11 // pred_check
          %p604 = pneg %p469
        $region34: #{_forward_jit.1} parent=11 // pred_check_branch
          %606 = sbr.rel (%p604) target = $region36
        $region35: #{_forward_jit.1} parent=11 // pred_region
          _
        $region36: #{_forward_jit.1} parent=11 // pred_fallthru
          _
        // Predicated region
        $region37: #{_forward_jit.1} parent=11 // pred_check
          %p607 = pneg %p490
        $region38: #{_forward_jit.1} parent=11 // pred_check_branch
          %609 = sbr.rel (%p607) target = $region40
        $region39: #{_forward_jit.1} parent=11 // pred_region
          _
        $region40: #{_forward_jit.1} parent=11 // pred_fallthru
          _
        // Predicated region
        $region41: #{_forward_jit.1} parent=11 // pred_check
          %p610 = pneg %p511
        $region42: #{_forward_jit.1} parent=11 // pred_check_branch
          %612 = sbr.rel (%p610) target = $region44
        $region43: #{_forward_jit.1} parent=11 // pred_region
          _
        $region44: #{_forward_jit.1} parent=11 // pred_fallthru
          _
      $region12: #{_forward_jit.1} parent=5 // pred_fallthru
        _
      %p613 = scmp.lt.s32.totalorder %s31, 2
      // Predicated region
      $region45: #{_forward_jit.1} parent=5 // pred_check
        %p614 = pneg %p613
      $region46: #{_forward_jit.1} parent=5 // pred_check_branch
        %616 = sbr.rel (%p614) target = $region48
      $region47: #{_forward_jit.1} parent=5 // pred_region
        // Predicated region
        $region49: #{_forward_jit.1} parent=47 // pred_check
          %p617 = pneg %p135
        $region50: #{_forward_jit.1} parent=47 // pred_check_branch
          %619 = sbr.rel (%p617) target = $region52
        $region51: #{_forward_jit.1} parent=47 // pred_region
          %p620 = scmp.lt.s32.totalorder %s31, 1
          %s621 = scalar_select %p620, %s31, 1
          %s622 = smul.addr %s621, 48
          %s623 = smul.addr %s622, 4
          %s624 = scalar_lea.vmem %s4, %s623
        $region52: #{_forward_jit.1} parent=47 // pred_fallthru
          _
        // Predicated region
        $region53: #{_forward_jit.1} parent=47 // pred_check
          %p625 = pneg %p161
        $region54: #{_forward_jit.1} parent=47 // pred_check_branch
          %627 = sbr.rel (%p625) target = $region56
        $region55: #{_forward_jit.1} parent=47 // pred_region
          %p628 = scmp.lt.s32.totalorder %s31, 1
          %s629 = scalar_select %p628, %s31, 1
          %s630 = smul.addr %s629, 12
          %s631 = scalar_lea.vmem %s5, %s630
        $region56: #{_forward_jit.1} parent=47 // pred_fallthru
          _
        // Predicated region
        $region57: #{_forward_jit.1} parent=47 // pred_check
          %p632 = pneg %p187
        $region58: #{_forward_jit.1} parent=47 // pred_check_branch
          %634 = sbr.rel (%p632) target = $region60
        $region59: #{_forward_jit.1} parent=47 // pred_region
          %p635 = scmp.lt.s32.totalorder %s31, 1
          %s636 = scalar_select %p635, %s31, 1
          %s637 = smul.addr %s636, 4
          %s638 = smul.addr %s637, 4
          %s639 = scalar_lea.vmem %s6, %s638
        $region60: #{_forward_jit.1} parent=47 // pred_fallthru
          _
        // Predicated region
        $region61: #{_forward_jit.1} parent=47 // pred_check
          %p640 = pneg %p213
        $region62: #{_forward_jit.1} parent=47 // pred_check_branch
          %642 = sbr.rel (%p640) target = $region64
        $region63: #{_forward_jit.1} parent=47 // pred_region
          %p643 = scmp.lt.s32.totalorder %s31, 1
          %s644 = scalar_select %p643, %s31, 1
          %s645 = scalar_lea.vmem %s7, %s644
        $region64: #{_forward_jit.1} parent=47 // pred_fallthru
          _
        // Predicated region
        $region65: #{_forward_jit.1} parent=47 // pred_check
          %p646 = pneg %p239
        $region66: #{_forward_jit.1} parent=47 // pred_check_branch
          %648 = sbr.rel (%p646) target = $region68
        $region67: #{_forward_jit.1} parent=47 // pred_region
          %p649 = scmp.lt.s32.totalorder %s31, 1
          %s650 = scalar_select %p649, %s31, 1
          %s651 = scalar_lea.vmem %s8, %s650
        $region68: #{_forward_jit.1} parent=47 // pred_fallthru
          _
        // Predicated region
        $region69: #{_forward_jit.1} parent=47 // pred_check
          %p652 = pneg %p265
        $region70: #{_forward_jit.1} parent=47 // pred_check_branch
          %654 = sbr.rel (%p652) target = $region72
        $region71: #{_forward_jit.1} parent=47 // pred_region
          %p655 = scmp.lt.s32.totalorder %s31, 1
          %s656 = scalar_select %p655, %s31, 1
          %s657 = scalar_lea.vmem %s9, %s656
        $region72: #{_forward_jit.1} parent=47 // pred_fallthru
          _
        // Predicated region
        $region73: #{_forward_jit.1} parent=47 // pred_check
          %p658 = pneg %p291
        $region74: #{_forward_jit.1} parent=47 // pred_check_branch
          %660 = sbr.rel (%p658) target = $region76
        $region75: #{_forward_jit.1} parent=47 // pred_region
          %p661 = scmp.lt.s32.totalorder %s31, 1
          %s662 = scalar_select %p661, %s31, 1
          %s663 = smul.addr %s662, 4
          %s664 = smul.addr %s663, 4
          %s665 = scalar_lea.vmem %s10, %s664
        $region76: #{_forward_jit.1} parent=47 // pred_fallthru
          _
        // Predicated region
        $region77: #{_forward_jit.1} parent=47 // pred_check
          %p666 = pneg %p317
        $region78: #{_forward_jit.1} parent=47 // pred_check_branch
          %668 = sbr.rel (%p666) target = $region80
        $region79: #{_forward_jit.1} parent=47 // pred_region
          %p669 = scmp.lt.s32.totalorder %s31, 1
          %s670 = scalar_select %p669, %s31, 1
          %s671 = scalar_lea.vmem %s11, %s670
        $region80: #{_forward_jit.1} parent=47 // pred_fallthru
          _
        // Predicated region
        $region81: #{_forward_jit.1} parent=47 // pred_check
          %p672 = pneg %p343
        $region82: #{_forward_jit.1} parent=47 // pred_check_branch
          %674 = sbr.rel (%p672) target = $region84
        $region83: #{_forward_jit.1} parent=47 // pred_region
          %p675 = scmp.lt.s32.totalorder %s31, 1
          %s676 = scalar_select %p675, %s31, 1
          %s677 = smul.addr %s676, 8
          %s678 = smul.addr %s677, 4
          %s679 = scalar_lea.vmem %s12, %s678
        $region84: #{_forward_jit.1} parent=47 // pred_fallthru
          _
        // Predicated region
        $region85: #{_forward_jit.1} parent=47 // pred_check
          %p680 = pneg %p369
        $region86: #{_forward_jit.1} parent=47 // pred_check_branch
          %682 = sbr.rel (%p680) target = $region88
        $region87: #{_forward_jit.1} parent=47 // pred_region
          %p683 = scmp.lt.s32.totalorder %s31, 1
          %s684 = scalar_select %p683, %s31, 1
          %s685 = scalar_lea.vmem %s13, %s684
        $region88: #{_forward_jit.1} parent=47 // pred_fallthru
          _
        // Predicated region
        $region89: #{_forward_jit.1} parent=47 // pred_check
          %p686 = pneg %p395
        $region90: #{_forward_jit.1} parent=47 // pred_check_branch
          %688 = sbr.rel (%p686) target = $region92
        $region91: #{_forward_jit.1} parent=47 // pred_region
          %p689 = scmp.lt.s32.totalorder %s31, 1
          %s690 = scalar_select %p689, %s31, 1
          %s691 = scalar_lea.vmem %s14, %s690
        $region92: #{_forward_jit.1} parent=47 // pred_fallthru
          _
        // Predicated region
        $region93: #{_forward_jit.1} parent=47 // pred_check
          %p692 = pneg %p421
        $region94: #{_forward_jit.1} parent=47 // pred_check_branch
          %694 = sbr.rel (%p692) target = $region96
        $region95: #{_forward_jit.1} parent=47 // pred_region
          %p695 = scmp.lt.s32.totalorder %s31, 1
          %s696 = scalar_select %p695, %s31, 1
          %s697 = scalar_lea.vmem %s15, %s696
        $region96: #{_forward_jit.1} parent=47 // pred_fallthru
          _
      $region48: #{_forward_jit.1} parent=5 // pred_fallthru
        _
      %p698 = scmp.le.s32.totalorder 1, %s31
      %p699 = scmp.lt.s32.totalorder %s31, 3
      %p700 = pnand %p698, %p699
      %p701 = pneg %p700
      // Predicated region
      $region97: #{_forward_jit.1} parent=5 // pred_check
        _
      $region98: #{_forward_jit.1} parent=5 // pred_check_branch
        %703 = sbr.rel (%p700) target = $region100
      $region99: #{_forward_jit.1} parent=5 // pred_region
        %s704 = ssub.s32 %s31, 1
        %p705 = pneg %p52
        %p706 = pneg %p49
        %p707 = pneg %p73
        %p708 = pneg %p70
        %p709 = pneg %p94
        %p710 = pneg %p91
        %p711 = pneg %p115
        %p712 = pneg %p112
        %p713 = scmp.lt.s32.totalorder %s36, 1
        %s714 = scalar_select %p713, %s36, 1
        %s715 = smul.addr %s714, 48
        %s716 = smul.addr %s715, 4
        %s717 = scalar_lea.vmem %s4, %s716
        %p718 = pneg %p141
        %p719 = pneg %p138
        %p720 = scmp.lt.s32.totalorder %s36, 1
        %s721 = scalar_select %p720, %s36, 1
        %s722 = smul.addr %s721, 12
        %s723 = scalar_lea.vmem %s5, %s722
        %p724 = pneg %p167
        %p725 = pneg %p164
        %p726 = scmp.lt.s32.totalorder %s36, 1
        %s727 = scalar_select %p726, %s36, 1
        %s728 = smul.addr %s727, 4
        %s729 = smul.addr %s728, 4
        %s730 = scalar_lea.vmem %s6, %s729
        %p731 = pneg %p193
        %p732 = pneg %p190
        %p733 = scmp.lt.s32.totalorder %s36, 1
        %s734 = scalar_select %p733, %s36, 1
        %s735 = scalar_lea.vmem %s7, %s734
        %p736 = pneg %p219
        %p737 = pneg %p216
        %p738 = scmp.lt.s32.totalorder %s36, 1
        %s739 = scalar_select %p738, %s36, 1
        %s740 = scalar_lea.vmem %s8, %s739
        %p741 = pneg %p245
        %p742 = pneg %p242
        %p743 = scmp.lt.s32.totalorder %s36, 1
        %s744 = scalar_select %p743, %s36, 1
        %s745 = scalar_lea.vmem %s9, %s744
        %p746 = pneg %p271
        %p747 = pneg %p268
        %p748 = scmp.lt.s32.totalorder %s36, 1
        %s749 = scalar_select %p748, %s36, 1
        %s750 = smul.addr %s749, 4
        %s751 = smul.addr %s750, 4
        %s752 = scalar_lea.vmem %s10, %s751
        %p753 = pneg %p297
        %p754 = pneg %p294
        %p755 = scmp.lt.s32.totalorder %s36, 1
        %s756 = scalar_select %p755, %s36, 1
        %s757 = scalar_lea.vmem %s11, %s756
        %p758 = pneg %p323
        %p759 = pneg %p320
        %p760 = scmp.lt.s32.totalorder %s36, 1
        %s761 = scalar_select %p760, %s36, 1
        %s762 = smul.addr %s761, 8
        %s763 = smul.addr %s762, 4
        %s764 = scalar_lea.vmem %s12, %s763
        %p765 = pneg %p349
        %p766 = pneg %p346
        %p767 = scmp.lt.s32.totalorder %s36, 1
        %s768 = scalar_select %p767, %s36, 1
        %s769 = scalar_lea.vmem %s13, %s768
        %p770 = pneg %p375
        %p771 = pneg %p372
        %p772 = scmp.lt.s32.totalorder %s36, 1
        %s773 = scalar_select %p772, %s36, 1
        %s774 = scalar_lea.vmem %s14, %s773
        %p775 = pneg %p401
        %p776 = pneg %p398
        %p777 = scmp.lt.s32.totalorder %s36, 1
        %s778 = scalar_select %p777, %s36, 1
        %s779 = scalar_lea.vmem %s15, %s778
        %p780 = pneg %p427
        %p781 = pneg %p424
        %p782 = pneg %p448
        %p783 = pneg %p445
        %p784 = pneg %p469
        %p785 = pneg %p466
        %p786 = pneg %p490
        %p787 = pneg %p487
        %p788 = pneg %p511
        %p789 = pneg %p508
        %p790 = pneg %p532
        %p791 = pneg %p529
        %p792 = pneg %p553
        %p793 = pneg %p550
        %p794 = pneg %p574
        %p795 = pneg %p571
        %p796 = scmp.lt.s32.totalorder %s36, 1
        %s797 = scalar_select %p796, %s36, 1
        %s798 = smul.addr %s797, 48
        %s799 = smul.addr %s798, 4
        %s800 = scalar_lea.vmem %s4, %s799
        %p801 = scmp.lt.s32.totalorder %s36, 1
        %s802 = scalar_select %p801, %s36, 1
        %s803 = smul.addr %s802, 12
        %s804 = scalar_lea.vmem %s5, %s803
        %p805 = scmp.lt.s32.totalorder %s36, 1
        %s806 = scalar_select %p805, %s36, 1
        %s807 = smul.addr %s806, 4
        %s808 = smul.addr %s807, 4
        %s809 = scalar_lea.vmem %s6, %s808
        %p810 = scmp.lt.s32.totalorder %s36, 1
        %s811 = scalar_select %p810, %s36, 1
        %s812 = scalar_lea.vmem %s7, %s811
        %p813 = scmp.lt.s32.totalorder %s36, 1
        %s814 = scalar_select %p813, %s36, 1
        %s815 = scalar_lea.vmem %s8, %s814
        %p816 = scmp.lt.s32.totalorder %s36, 1
        %s817 = scalar_select %p816, %s36, 1
        %s818 = scalar_lea.vmem %s9, %s817
        %p819 = scmp.lt.s32.totalorder %s36, 1
        %s820 = scalar_select %p819, %s36, 1
        %s821 = smul.addr %s820, 4
        %s822 = smul.addr %s821, 4
        %s823 = scalar_lea.vmem %s10, %s822
        %p824 = scmp.lt.s32.totalorder %s36, 1
        %s825 = scalar_select %p824, %s36, 1
        %s826 = scalar_lea.vmem %s11, %s825
        %p827 = scmp.lt.s32.totalorder %s36, 1
        %s828 = scalar_select %p827, %s36, 1
        %s829 = smul.addr %s828, 8
        %s830 = smul.addr %s829, 4
        %s831 = scalar_lea.vmem %s12, %s830
        %p832 = scmp.lt.s32.totalorder %s36, 1
        %s833 = scalar_select %p832, %s36, 1
        %s834 = scalar_lea.vmem %s13, %s833
        %p835 = scmp.lt.s32.totalorder %s36, 1
        %s836 = scalar_select %p835, %s36, 1
        %s837 = scalar_lea.vmem %s14, %s836
        %p838 = scmp.lt.s32.totalorder %s36, 1
        %s839 = scalar_select %p838, %s36, 1
        %s840 = scalar_lea.vmem %s15, %s839
        %p842 = scmp.eq.s32.totalorder %s36, 0
        // Predicated region
        $region101: #{_forward_jit.1} parent=99 // pred_check
          %p843 = pneg %p842
        $region102: #{_forward_jit.1} parent=99 // pred_check_branch
          %845 = sbr.rel (%p843) target = $region104
        $region103: #{_forward_jit.1} parent=99 // pred_region
          %v846 = vld [vmem:[%s0] sm:$0xff]
          %v847 = vld [vmem:[%s2] sm:$0x1]
          %v848 = vld [vmem:[%s3] sm:$0x1]
          %vm849 = vcmask 261120
          %v850 = vsel %vm849, %v846, 0.0
          %851 = vadd.xlane.f32.xlu0 %v850
          %v852 = vpop.xlane.xlu0 %851
          %v853 = vrcp.pop 32.0
          %v854 = vmul.f32 32.0, %v853
          %v855 = vsub.f32 1.0, %v854
          %v856 = vmul.f32 %v853, %v855
          %v857 = vadd.f32 %v853, %v856
          %vm858 = vweird.f32 %v853
          %v859 = vsel %vm858, %v853, %v857
          %v860 = vmul.f32 %v852, %v859
          %v861 = vmul.f32 %v846, %v846
          %v862 = vsel %vm849, %v861, 0.0
          %863 = vadd.xlane.f32.xlu0 %v862
          %v864 = vpop.xlane.xlu0 %863
          %v865 = vmul.f32 %v864, %v859
          %v866 = vsub.f32 %v846, %v860
          %v867 = vmul.f32 %v860, %v860
          %v868 = vsub.f32 %v865, %v867
          %v869 = vadd.f32 %v868, 1e-12
          %v870 = vrsqrt.pop %v869
          %v871 = vmul.f32 %v870, %v869
          %v872 = vmul.f32 %v871, %v870
          %v873 = vmul.f32 0.5, %v872
          %v874 = vsub.f32 1.5, %v873
          %v875 = vmul.f32 %v870, %v874
          %vm876 = vweird.f32 %v869
          %vm877 = vweird.f32 %v870
          %vm878 = vmor %vm876, %vm877
          %v879 = vsel %vm878, %v870, %v875
          %v880 = vmul.f32 %v866, %v879
          %v882 = vperm.slane %v847, 0
          %v884 = vmul.f32 %v880, %v882
          %v886 = vperm.slane %v848, 0
          %v888 = vadd.f32 %v884, %v886
          %889 = vst.msk [vmem:[#allocation2] sm:$0xff] %vm849, %v888
        $region104: #{_forward_jit.1} parent=99 // pred_fallthru
          _
        %v890 = vld [vmem:[#allocation2] sm:$0xff]
        %v891 = vpack.c.bf16 %v890, %v890
        %v892 = vld [vmem:[%s800] sm:$0xf]
        %v893 = vld [vmem:[%s800 + $0x4] sm:$0xf]
        %v894 = vld [vmem:[%s800 + $0x8] sm:$0xf]
        %v895 = vld [vmem:[%s800 + $0xc] sm:$0xf]
        %v896 = vld [vmem:[%s800 + $0x10] sm:$0xf]
        %v897 = vld [vmem:[%s800 + $0x14] sm:$0xf]
        %v898 = vld [vmem:[%s800 + $0x18] sm:$0xf]
        %v899 = vld [vmem:[%s800 + $0x1c] sm:$0xf]
        %v900 = vld [vmem:[%s800 + $0x20] sm:$0xf]
        %v901 = vld [vmem:[%s800 + $0x24] sm:$0xf]
        %v902 = vld [vmem:[%s800 + $0x28] sm:$0xf]
        %v903 = vld [vmem:[%s800 + $0x2c] sm:$0xf]
        %v904 = vld [vmem:[%s800 + $0x30] sm:$0xf]
        %v905 = vld [vmem:[%s800 + $0x34] sm:$0xf]
        %v906 = vld [vmem:[%s800 + $0x38] sm:$0xf]
        %v907 = vld [vmem:[%s800 + $0x3c] sm:$0xf]
        %v908 = vld [vmem:[%s800 + $0x40] sm:$0xf]
        %v909 = vld [vmem:[%s800 + $0x44] sm:$0xf]
        %v910 = vld [vmem:[%s800 + $0x48] sm:$0xf]
        %v911 = vld [vmem:[%s800 + $0x4c] sm:$0xf]
        %v912 = vld [vmem:[%s800 + $0x50] sm:$0xf]
        %v913 = vld [vmem:[%s800 + $0x54] sm:$0xf]
        %v914 = vld [vmem:[%s800 + $0x58] sm:$0xf]
        %v915 = vld [vmem:[%s800 + $0x5c] sm:$0xf]
        %v916 = vld [vmem:[%s800 + $0x60] sm:$0xf]
        %v917 = vld [vmem:[%s800 + $0x64] sm:$0xf]
        %v918 = vld [vmem:[%s800 + $0x68] sm:$0xf]
        %v919 = vld [vmem:[%s800 + $0x6c] sm:$0xf]
        %v920 = vld [vmem:[%s800 + $0x70] sm:$0xf]
        %v921 = vld [vmem:[%s800 + $0x74] sm:$0xf]
        %v922 = vld [vmem:[%s800 + $0x78] sm:$0xf]
        %v923 = vld [vmem:[%s800 + $0x7c] sm:$0xf]
        %v924 = vld [vmem:[%s800 + $0x80] sm:$0xf]
        %v925 = vld [vmem:[%s800 + $0x84] sm:$0xf]
        %v926 = vld [vmem:[%s800 + $0x88] sm:$0xf]
        %v927 = vld [vmem:[%s800 + $0x8c] sm:$0xf]
        %v928 = vld [vmem:[%s800 + $0x90] sm:$0xf]
        %v929 = vld [vmem:[%s800 + $0x94] sm:$0xf]
        %v930 = vld [vmem:[%s800 + $0x98] sm:$0xf]
        %v931 = vld [vmem:[%s800 + $0x9c] sm:$0xf]
        %v932 = vld [vmem:[%s800 + $0xa0] sm:$0xf]
        %v933 = vld [vmem:[%s800 + $0xa4] sm:$0xf]
        %v934 = vld [vmem:[%s800 + $0xa8] sm:$0xf]
        %v935 = vld [vmem:[%s800 + $0xac] sm:$0xf]
        %v936 = vld [vmem:[%s800 + $0xb0] sm:$0xf]
        %v937 = vld [vmem:[%s800 + $0xb4] sm:$0xf]
        %v938 = vld [vmem:[%s800 + $0xb8] sm:$0xf]
        %v939 = vld [vmem:[%s800 + $0xbc] sm:$0xf]
        %v940 = vld [vmem:[%s804] sm:$0x1]
        %v941 = vld [vmem:[%s804 + $0x1] sm:$0x1]
        %v942 = vld [vmem:[%s804 + $0x2] sm:$0x1]
        %v943 = vld [vmem:[%s804 + $0x3] sm:$0x1]
        %v944 = vld [vmem:[%s804 + $0x4] sm:$0x1]
        %v945 = vld [vmem:[%s804 + $0x5] sm:$0x1]
        %v946 = vld [vmem:[%s804 + $0x6] sm:$0x1]
        %v947 = vld [vmem:[%s804 + $0x7] sm:$0x1]
        %v948 = vld [vmem:[%s804 + $0x8] sm:$0x1]
        %v949 = vld [vmem:[%s804 + $0x9] sm:$0x1]
        %v950 = vld [vmem:[%s804 + $0xa] sm:$0x1]
        %v951 = vld [vmem:[%s804 + $0xb] sm:$0x1]
        %v956 = vperm.slane %v940, 0
        %v957 = vperm.slane %v941, 0
        %v958 = vperm.slane %v942, 0
        %v959 = vperm.slane %v943, 0
        %v968 = vunpack.c.l.b16 %v892
        %v969 = vunpack.c.l.b16 %v893
        %v970 = vunpack.c.l.b16 %v894
        %v971 = vunpack.c.l.b16 %v895
        %v972 = vpack.c.b16 %v969, %v968
        %v973 = vpack.c.b16 %v971, %v970
        %vm976 = vcmask 261120
        %v978 = vsel %vm976, %v891, 0
        %980 = vmatpush.bf16.msra.mxu0 0
        %981 = vmatpush.bf16.msra.mxu0 0
        %982 = vmatpush.bf16.msra.mxu0 0
        %983 = vmatpush.bf16.msra.mxu0 0
        %984 = vmatpush.bf16.msra.mxu0 0
        %985 = vmatpush.bf16.msra.mxu0 0
        %986 = vmatpush.bf16.msra.mxu0 %v973
        %987 = vmatpush.bf16.msra.mxu0 %v972
        %988 = vmatmul.bf16.gmra.mxu0 %v978
        %v989 = vpop.f32.mrf.mxu0
        %v990 = vadd.f32 %v956, %v989
        %v991 = vpop.f32.mrf.mxu0
        %992 = vdwg.mxu0
        %v997 = vunpack.c.l.b16 %v896
        %v998 = vunpack.c.l.b16 %v897
        %v999 = vunpack.c.l.b16 %v898
        %v1000 = vunpack.c.l.b16 %v899
        %v1001 = vpack.c.b16 %v998, %v997
        %v1002 = vpack.c.b16 %v1000, %v999
        %1005 = vmatpush.bf16.msra.mxu0 0
        %1006 = vmatpush.bf16.msra.mxu0 0
        %1007 = vmatpush.bf16.msra.mxu0 0
        %1008 = vmatpush.bf16.msra.mxu0 0
        %1009 = vmatpush.bf16.msra.mxu0 0
        %1010 = vmatpush.bf16.msra.mxu0 0
        %1011 = vmatpush.bf16.msra.mxu0 %v1002
        %1012 = vmatpush.bf16.msra.mxu0 %v1001
        %1013 = vmatmul.bf16.gmra.mxu0 %v978
        %v1014 = vpop.f32.mrf.mxu0
        %v1015 = vadd.f32 %v957, %v1014
        %v1016 = vpop.f32.mrf.mxu0
        %1017 = vdwg.mxu0
        %v1022 = vunpack.c.l.b16 %v900
        %v1023 = vunpack.c.l.b16 %v901
        %v1024 = vunpack.c.l.b16 %v902
        %v1025 = vunpack.c.l.b16 %v903
        %v1026 = vpack.c.b16 %v1023, %v1022
        %v1027 = vpack.c.b16 %v1025, %v1024
        %1030 = vmatpush.bf16.msra.mxu0 0
        %1031 = vmatpush.bf16.msra.mxu0 0
        %1032 = vmatpush.bf16.msra.mxu0 0
        %1033 = vmatpush.bf16.msra.mxu0 0
        %1034 = vmatpush.bf16.msra.mxu0 0
        %1035 = vmatpush.bf16.msra.mxu0 0
        %1036 = vmatpush.bf16.msra.mxu0 %v1027
        %1037 = vmatpush.bf16.msra.mxu0 %v1026
        %1038 = vmatmul.bf16.gmra.mxu0 %v978
        %v1039 = vpop.f32.mrf.mxu0
        %v1040 = vadd.f32 %v958, %v1039
        %v1041 = vpop.f32.mrf.mxu0
        %1042 = vdwg.mxu0
        %v1047 = vunpack.c.l.b16 %v904
        %v1048 = vunpack.c.l.b16 %v905
        %v1049 = vunpack.c.l.b16 %v906
        %v1050 = vunpack.c.l.b16 %v907
        %v1051 = vpack.c.b16 %v1048, %v1047
        %v1052 = vpack.c.b16 %v1050, %v1049
        %1055 = vmatpush.bf16.msra.mxu0 0
        %1056 = vmatpush.bf16.msra.mxu0 0
        %1057 = vmatpush.bf16.msra.mxu0 0
        %1058 = vmatpush.bf16.msra.mxu0 0
        %1059 = vmatpush.bf16.msra.mxu0 0
        %1060 = vmatpush.bf16.msra.mxu0 0
        %1061 = vmatpush.bf16.msra.mxu0 %v1052
        %1062 = vmatpush.bf16.msra.mxu0 %v1051
        %1063 = vmatmul.bf16.gmra.mxu0 %v978
        %v1064 = vpop.f32.mrf.mxu0
        %v1065 = vadd.f32 %v959, %v1064
        %v1066 = vpop.f32.mrf.mxu0
        %1067 = vdwg.mxu0
        %v1068 = vpack.c.bf16 %v990, %v990
        %v1069 = vpack.c.bf16 %v1015, %v1015
        %v1070 = vpack.c.bf16 %v1040, %v1040
        %v1071 = vpack.c.bf16 %v1065, %v1065
        %v1076 = vperm.slane %v944, 0
        %v1077 = vperm.slane %v945, 0
        %v1078 = vperm.slane %v946, 0
        %v1079 = vperm.slane %v947, 0
        %v1088 = vunpack.c.l.b16 %v908
        %v1089 = vunpack.c.l.b16 %v909
        %v1090 = vunpack.c.l.b16 %v910
        %v1091 = vunpack.c.l.b16 %v911
        %v1092 = vpack.c.b16 %v1089, %v1088
        %v1093 = vpack.c.b16 %v1091, %v1090
        %1096 = vmatpush.bf16.msra.mxu0 0
        %1097 = vmatpush.bf16.msra.mxu0 0
        %1098 = vmatpush.bf16.msra.mxu0 0
        %1099 = vmatpush.bf16.msra.mxu0 0
        %1100 = vmatpush.bf16.msra.mxu0 0
        %1101 = vmatpush.bf16.msra.mxu0 0
        %1102 = vmatpush.bf16.msra.mxu0 %v1093
        %1103 = vmatpush.bf16.msra.mxu0 %v1092
        %1104 = vmatmul.bf16.gmra.mxu0 %v978
        %v1105 = vpop.f32.mrf.mxu0
        %v1106 = vadd.f32 %v1076, %v1105
        %v1107 = vpop.f32.mrf.mxu0
        %1108 = vdwg.mxu0
        %v1113 = vunpack.c.l.b16 %v912
        %v1114 = vunpack.c.l.b16 %v913
        %v1115 = vunpack.c.l.b16 %v914
        %v1116 = vunpack.c.l.b16 %v915
        %v1117 = vpack.c.b16 %v1114, %v1113
        %v1118 = vpack.c.b16 %v1116, %v1115
        %1121 = vmatpush.bf16.msra.mxu0 0
        %1122 = vmatpush.bf16.msra.mxu0 0
        %1123 = vmatpush.bf16.msra.mxu0 0
        %1124 = vmatpush.bf16.msra.mxu0 0
        %1125 = vmatpush.bf16.msra.mxu0 0
        %1126 = vmatpush.bf16.msra.mxu0 0
        %1127 = vmatpush.bf16.msra.mxu0 %v1118
        %1128 = vmatpush.bf16.msra.mxu0 %v1117
        %1129 = vmatmul.bf16.gmra.mxu0 %v978
        %v1130 = vpop.f32.mrf.mxu0
        %v1131 = vadd.f32 %v1077, %v1130
        %v1132 = vpop.f32.mrf.mxu0
        %1133 = vdwg.mxu0
        %v1138 = vunpack.c.l.b16 %v916
        %v1139 = vunpack.c.l.b16 %v917
        %v1140 = vunpack.c.l.b16 %v918
        %v1141 = vunpack.c.l.b16 %v919
        %v1142 = vpack.c.b16 %v1139, %v1138
        %v1143 = vpack.c.b16 %v1141, %v1140
        %1146 = vmatpush.bf16.msra.mxu0 0
        %1147 = vmatpush.bf16.msra.mxu0 0
        %1148 = vmatpush.bf16.msra.mxu0 0
        %1149 = vmatpush.bf16.msra.mxu0 0
        %1150 = vmatpush.bf16.msra.mxu0 0
        %1151 = vmatpush.bf16.msra.mxu0 0
        %1152 = vmatpush.bf16.msra.mxu0 %v1143
        %1153 = vmatpush.bf16.msra.mxu0 %v1142
        %1154 = vmatmul.bf16.gmra.mxu0 %v978
        %v1155 = vpop.f32.mrf.mxu0
        %v1156 = vadd.f32 %v1078, %v1155
        %v1157 = vpop.f32.mrf.mxu0
        %1158 = vdwg.mxu0
        %v1163 = vunpack.c.l.b16 %v920
        %v1164 = vunpack.c.l.b16 %v921
        %v1165 = vunpack.c.l.b16 %v922
        %v1166 = vunpack.c.l.b16 %v923
        %v1167 = vpack.c.b16 %v1164, %v1163
        %v1168 = vpack.c.b16 %v1166, %v1165
        %1171 = vmatpush.bf16.msra.mxu0 0
        %1172 = vmatpush.bf16.msra.mxu0 0
        %1173 = vmatpush.bf16.msra.mxu0 0
        %1174 = vmatpush.bf16.msra.mxu0 0
        %1175 = vmatpush.bf16.msra.mxu0 0
        %1176 = vmatpush.bf16.msra.mxu0 0
        %1177 = vmatpush.bf16.msra.mxu0 %v1168
        %1178 = vmatpush.bf16.msra.mxu0 %v1167
        %1179 = vmatmul.bf16.gmra.mxu0 %v978
        %v1180 = vpop.f32.mrf.mxu0
        %v1181 = vadd.f32 %v1079, %v1180
        %v1182 = vpop.f32.mrf.mxu0
        %1183 = vdwg.mxu0
        %v1184 = vpack.c.bf16 %v1106, %v1106
        %v1185 = vpack.c.bf16 %v1131, %v1131
        %v1186 = vpack.c.bf16 %v1156, %v1156
        %v1187 = vpack.c.bf16 %v1181, %v1181
        %v1192 = vperm.slane %v948, 0
        %v1193 = vperm.slane %v949, 0
        %v1194 = vperm.slane %v950, 0
        %v1195 = vperm.slane %v951, 0
        %v1204 = vunpack.c.l.b16 %v924
        %v1205 = vunpack.c.l.b16 %v925
        %v1206 = vunpack.c.l.b16 %v926
        %v1207 = vunpack.c.l.b16 %v927
        %v1208 = vpack.c.b16 %v1205, %v1204
        %v1209 = vpack.c.b16 %v1207, %v1206
        %1212 = vmatpush.bf16.msra.mxu0 0
        %1213 = vmatpush.bf16.msra.mxu0 0
        %1214 = vmatpush.bf16.msra.mxu0 0
        %1215 = vmatpush.bf16.msra.mxu0 0
        %1216 = vmatpush.bf16.msra.mxu0 0
        %1217 = vmatpush.bf16.msra.mxu0 0
        %1218 = vmatpush.bf16.msra.mxu0 %v1209
        %1219 = vmatpush.bf16.msra.mxu0 %v1208
        %1220 = vmatmul.bf16.gmra.mxu0 %v978
        %v1221 = vpop.f32.mrf.mxu0
        %v1222 = vadd.f32 %v1192, %v1221
        %v1223 = vpop.f32.mrf.mxu0
        %1224 = vdwg.mxu0
        %v1229 = vunpack.c.l.b16 %v928
        %v1230 = vunpack.c.l.b16 %v929
        %v1231 = vunpack.c.l.b16 %v930
        %v1232 = vunpack.c.l.b16 %v931
        %v1233 = vpack.c.b16 %v1230, %v1229
        %v1234 = vpack.c.b16 %v1232, %v1231
        %1237 = vmatpush.bf16.msra.mxu0 0
        %1238 = vmatpush.bf16.msra.mxu0 0
        %1239 = vmatpush.bf16.msra.mxu0 0
        %1240 = vmatpush.bf16.msra.mxu0 0
        %1241 = vmatpush.bf16.msra.mxu0 0
        %1242 = vmatpush.bf16.msra.mxu0 0
        %1243 = vmatpush.bf16.msra.mxu0 %v1234
        %1244 = vmatpush.bf16.msra.mxu0 %v1233
        %1245 = vmatmul.bf16.gmra.mxu0 %v978
        %v1246 = vpop.f32.mrf.mxu0
        %v1247 = vadd.f32 %v1193, %v1246
        %v1248 = vpop.f32.mrf.mxu0
        %1249 = vdwg.mxu0
        %v1254 = vunpack.c.l.b16 %v932
        %v1255 = vunpack.c.l.b16 %v933
        %v1256 = vunpack.c.l.b16 %v934
        %v1257 = vunpack.c.l.b16 %v935
        %v1258 = vpack.c.b16 %v1255, %v1254
        %v1259 = vpack.c.b16 %v1257, %v1256
        %1262 = vmatpush.bf16.msra.mxu0 0
        %1263 = vmatpush.bf16.msra.mxu0 0
        %1264 = vmatpush.bf16.msra.mxu0 0
        %1265 = vmatpush.bf16.msra.mxu0 0
        %1266 = vmatpush.bf16.msra.mxu0 0
        %1267 = vmatpush.bf16.msra.mxu0 0
        %1268 = vmatpush.bf16.msra.mxu0 %v1259
        %1269 = vmatpush.bf16.msra.mxu0 %v1258
        %1270 = vmatmul.bf16.gmra.mxu0 %v978
        %v1271 = vpop.f32.mrf.mxu0
        %v1272 = vadd.f32 %v1194, %v1271
        %v1273 = vpop.f32.mrf.mxu0
        %1274 = vdwg.mxu0
        %v1279 = vunpack.c.l.b16 %v936
        %v1280 = vunpack.c.l.b16 %v937
        %v1281 = vunpack.c.l.b16 %v938
        %v1282 = vunpack.c.l.b16 %v939
        %v1283 = vpack.c.b16 %v1280, %v1279
        %v1284 = vpack.c.b16 %v1282, %v1281
        %1287 = vmatpush.bf16.msra.mxu0 0
        %1288 = vmatpush.bf16.msra.mxu0 0
        %1289 = vmatpush.bf16.msra.mxu0 0
        %1290 = vmatpush.bf16.msra.mxu0 0
        %1291 = vmatpush.bf16.msra.mxu0 0
        %1292 = vmatpush.bf16.msra.mxu0 0
        %1293 = vmatpush.bf16.msra.mxu0 %v1284
        %1294 = vmatpush.bf16.msra.mxu0 %v1283
        %1295 = vmatmul.bf16.gmra.mxu0 %v978
        %v1296 = vpop.f32.mrf.mxu0
        %v1297 = vadd.f32 %v1195, %v1296
        %v1298 = vpop.f32.mrf.mxu0
        %1299 = vdwg.mxu0
        %v1300 = vpack.c.bf16 %v1222, %v1222
        %v1301 = vpack.c.bf16 %v1247, %v1247
        %v1302 = vpack.c.bf16 %v1272, %v1272
        %v1303 = vpack.c.bf16 %v1297, %v1297
        %v1304 = vld [vmem:[%s1] sm:$0x1]
        %v1306 = vperm.slane %v1304, 0
        %vm1308 = vcmask 64512
        %v1310 = vsel %vm1308, %v1068, 0
        %v1313 = vsel %vm1308, %v1184, 0
        %1315 = vmatpush.bf16.xpose.msra.mxu0 0
        %1316 = vmatpush.bf16.xpose.msra.mxu0 0
        %1317 = vmatpush.bf16.xpose.msra.mxu0 0
        %1318 = vmatpush.bf16.xpose.msra.mxu0 0
        %1319 = vmatpush.bf16.xpose.msra.mxu0 0
        %1320 = vmatpush.bf16.xpose.msra.mxu0 0
        %1321 = vmatpush.bf16.xpose.msra.mxu0 0
        %1322 = vmatpush.bf16.xpose.msra.mxu0 %v1313
        %1323 = vmatmul.bf16.gmra.mxu0 %v1310
        %v1324 = vpop.f32.mrf.mxu0
        %v1325 = vadd.f32 %v1306, %v1324
        %v1326 = vpop.f32.mrf.mxu0
        %1327 = vdwg.mxu0
        %v1329 = vsel %vm1308, %v1069, 0
        %v1332 = vsel %vm1308, %v1185, 0
        %1334 = vmatpush.bf16.xpose.msra.mxu0 0
        %1335 = vmatpush.bf16.xpose.msra.mxu0 0
        %1336 = vmatpush.bf16.xpose.msra.mxu0 0
        %1337 = vmatpush.bf16.xpose.msra.mxu0 0
        %1338 = vmatpush.bf16.xpose.msra.mxu0 0
        %1339 = vmatpush.bf16.xpose.msra.mxu0 0
        %1340 = vmatpush.bf16.xpose.msra.mxu0 0
        %1341 = vmatpush.bf16.xpose.msra.mxu0 %v1332
        %1342 = vmatmul.bf16.gmra.mxu0 %v1329
        %v1343 = vpop.f32.mrf.mxu0
        %v1344 = vadd.f32 %v1306, %v1343
        %v1345 = vpop.f32.mrf.mxu0
        %1346 = vdwg.mxu0
        %v1348 = vsel %vm1308, %v1070, 0
        %v1351 = vsel %vm1308, %v1186, 0
        %1353 = vmatpush.bf16.xpose.msra.mxu0 0
        %1354 = vmatpush.bf16.xpose.msra.mxu0 0
        %1355 = vmatpush.bf16.xpose.msra.mxu0 0
        %1356 = vmatpush.bf16.xpose.msra.mxu0 0
        %1357 = vmatpush.bf16.xpose.msra.mxu0 0
        %1358 = vmatpush.bf16.xpose.msra.mxu0 0
        %1359 = vmatpush.bf16.xpose.msra.mxu0 0
        %1360 = vmatpush.bf16.xpose.msra.mxu0 %v1351
        %1361 = vmatmul.bf16.gmra.mxu0 %v1348
        %v1362 = vpop.f32.mrf.mxu0
        %v1363 = vadd.f32 %v1306, %v1362
        %v1364 = vpop.f32.mrf.mxu0
        %1365 = vdwg.mxu0
        %v1367 = vsel %vm1308, %v1071, 0
        %v1370 = vsel %vm1308, %v1187, 0
        %1372 = vmatpush.bf16.xpose.msra.mxu0 0
        %1373 = vmatpush.bf16.xpose.msra.mxu0 0
        %1374 = vmatpush.bf16.xpose.msra.mxu0 0
        %1375 = vmatpush.bf16.xpose.msra.mxu0 0
        %1376 = vmatpush.bf16.xpose.msra.mxu0 0
        %1377 = vmatpush.bf16.xpose.msra.mxu0 0
        %1378 = vmatpush.bf16.xpose.msra.mxu0 0
        %1379 = vmatpush.bf16.xpose.msra.mxu0 %v1370
        %1380 = vmatmul.bf16.gmra.mxu0 %v1367
        %v1381 = vpop.f32.mrf.mxu0
        %v1382 = vadd.f32 %v1306, %v1381
        %v1383 = vpop.f32.mrf.mxu0
        %1384 = vdwg.mxu0
        %v1385 = vsel %vm1308, %v1325, -inf
        %1386 = vmax.xlane.f32.xlu0 %v1385
        %v1387 = vpop.xlane.xlu0 %1386
        %v1388 = vsel %vm1308, %v1344, -inf
        %1389 = vmax.xlane.f32.xlu0 %v1388
        %v1390 = vpop.xlane.xlu0 %1389
        %v1391 = vsel %vm1308, %v1363, -inf
        %1392 = vmax.xlane.f32.xlu0 %v1391
        %v1393 = vpop.xlane.xlu0 %1392
        %v1394 = vsel %vm1308, %v1382, -inf
        %1395 = vmax.xlane.f32.xlu0 %v1394
        %v1396 = vpop.xlane.xlu0 %1395
        %v1397 = vsub.f32 %v1325, %v1387
        %v1398 = vsub.f32 %v1344, %v1390
        %v1399 = vsub.f32 %v1363, %v1393
        %v1400 = vsub.f32 %v1382, %v1396
        %v1401 = vmul.f32 %v1397, 1.442695
        %v1402 = vpow.pop %v1401
        %v1403 = vmul.f32 %v1398, 1.442695
        %v1404 = vpow.pop %v1403
        %v1405 = vmul.f32 %v1399, 1.442695
        %v1406 = vpow.pop %v1405
        %v1407 = vmul.f32 %v1400, 1.442695
        %v1408 = vpow.pop %v1407
        %v1409 = vsel %vm1308, %v1402, 0.0
        %1410 = vadd.xlane.f32.xlu0 %v1409
        %v1411 = vpop.xlane.xlu0 %1410
        %v1412 = vsel %vm1308, %v1404, 0.0
        %1413 = vadd.xlane.f32.xlu0 %v1412
        %v1414 = vpop.xlane.xlu0 %1413
        %v1415 = vsel %vm1308, %v1406, 0.0
        %1416 = vadd.xlane.f32.xlu0 %v1415
        %v1417 = vpop.xlane.xlu0 %1416
        %v1418 = vsel %vm1308, %v1408, 0.0
        %1419 = vadd.xlane.f32.xlu0 %v1418
        %v1420 = vpop.xlane.xlu0 %1419
        %v1421 = vrcp.pop %v1411
        %v1422 = vrcp.pop %v1414
        %v1423 = vrcp.pop %v1417
        %v1424 = vrcp.pop %v1420
        %v1425 = vmul.f32 %v1402, %v1421
        %v1426 = vmul.f32 %v1404, %v1422
        %v1427 = vmul.f32 %v1406, %v1423
        %v1428 = vmul.f32 %v1408, %v1424
        %v1429 = vpack.c.bf16 %v1425, %v1425
        %v1430 = vpack.c.bf16 %v1426, %v1426
        %v1431 = vpack.c.bf16 %v1427, %v1427
        %v1432 = vpack.c.bf16 %v1428, %v1428
        %v1434 = vsel %vm1308, %v1429, 0
        %vm1436 = vcmask 1043456
        %v1438 = vsel %vm1436, %v1300, 0
        %1440 = vmatpush.bf16.msra.mxu0 0
        %1441 = vmatpush.bf16.msra.mxu0 0
        %1442 = vmatpush.bf16.msra.mxu0 0
        %1443 = vmatpush.bf16.msra.mxu0 0
        %1444 = vmatpush.bf16.msra.mxu0 0
        %1445 = vmatpush.bf16.msra.mxu0 0
        %1446 = vmatpush.bf16.msra.mxu0 0
        %1447 = vmatpush.bf16.msra.mxu0 %v1438
        %1448 = vmatmul.bf16.gmra.mxu0 %v1434
        %v1449 = vpop.f32.mrf.mxu0
        %v1450 = vadd.f32 0.0, %v1449
        %v1451 = vpop.f32.mrf.mxu0
        %1452 = vdwg.mxu0
        %v1454 = vsel %vm1308, %v1430, 0
        %v1457 = vsel %vm1436, %v1301, 0
        %1459 = vmatpush.bf16.msra.mxu0 0
        %1460 = vmatpush.bf16.msra.mxu0 0
        %1461 = vmatpush.bf16.msra.mxu0 0
        %1462 = vmatpush.bf16.msra.mxu0 0
        %1463 = vmatpush.bf16.msra.mxu0 0
        %1464 = vmatpush.bf16.msra.mxu0 0
        %1465 = vmatpush.bf16.msra.mxu0 0
        %1466 = vmatpush.bf16.msra.mxu0 %v1457
        %1467 = vmatmul.bf16.gmra.mxu0 %v1454
        %v1468 = vpop.f32.mrf.mxu0
        %v1469 = vadd.f32 0.0, %v1468
        %v1470 = vpop.f32.mrf.mxu0
        %1471 = vdwg.mxu0
        %v1473 = vsel %vm1308, %v1431, 0
        %v1476 = vsel %vm1436, %v1302, 0
        %1478 = vmatpush.bf16.msra.mxu0 0
        %1479 = vmatpush.bf16.msra.mxu0 0
        %1480 = vmatpush.bf16.msra.mxu0 0
        %1481 = vmatpush.bf16.msra.mxu0 0
        %1482 = vmatpush.bf16.msra.mxu0 0
        %1483 = vmatpush.bf16.msra.mxu0 0
        %1484 = vmatpush.bf16.msra.mxu0 0
        %1485 = vmatpush.bf16.msra.mxu0 %v1476
        %1486 = vmatmul.bf16.gmra.mxu0 %v1473
        %v1487 = vpop.f32.mrf.mxu0
        %v1488 = vadd.f32 0.0, %v1487
        %v1489 = vpop.f32.mrf.mxu0
        %1490 = vdwg.mxu0
        %v1492 = vsel %vm1308, %v1432, 0
        %v1495 = vsel %vm1436, %v1303, 0
        %1497 = vmatpush.bf16.msra.mxu0 0
        %1498 = vmatpush.bf16.msra.mxu0 0
        %1499 = vmatpush.bf16.msra.mxu0 0
        %1500 = vmatpush.bf16.msra.mxu0 0
        %1501 = vmatpush.bf16.msra.mxu0 0
        %1502 = vmatpush.bf16.msra.mxu0 0
        %1503 = vmatpush.bf16.msra.mxu0 0
        %1504 = vmatpush.bf16.msra.mxu0 %v1495
        %1505 = vmatmul.bf16.gmra.mxu0 %v1492
        %v1506 = vpop.f32.mrf.mxu0
        %v1507 = vadd.f32 0.0, %v1506
        %v1508 = vpop.f32.mrf.mxu0
        %1509 = vdwg.mxu0
        %v1510 = vpack.c.bf16 %v1450, %v1450
        %v1511 = vpack.c.bf16 %v1469, %v1469
        %v1512 = vpack.c.bf16 %v1488, %v1488
        %v1513 = vpack.c.bf16 %v1507, %v1507
        %v1514 = vld [vmem:[%s809] sm:$0xf]
        %v1515 = vld [vmem:[%s809 + $0x4] sm:$0xf]
        %v1516 = vld [vmem:[%s809 + $0x8] sm:$0xf]
        %v1517 = vld [vmem:[%s809 + $0xc] sm:$0xf]
        %v1519 = vsel %vm1308, %v1510, 0
        %v1522 = vsel %vm1436, %v1514, 0
        %1524 = vmatpush.bf16.msra.mxu0 0
        %1525 = vmatpush.bf16.msra.mxu0 0
        %1526 = vmatpush.bf16.msra.mxu0 0
        %1527 = vmatpush.bf16.msra.mxu0 0
        %1528 = vmatpush.bf16.msra.mxu0 0
        %1529 = vmatpush.bf16.msra.mxu0 0
        %1530 = vmatpush.bf16.msra.mxu0 0
        %1531 = vmatpush.bf16.msra.mxu0 %v1522
        %1532 = vmatmul.bf16.gmra.mxu0 %v1519
        %v1533 = vpop.f32.mrf.mxu0
        %v1534 = vadd.f32 0.0, %v1533
        %v1535 = vpop.f32.mrf.mxu0
        %1536 = vdwg.mxu0
        %v1538 = vsel %vm1308, %v1511, 0
        %v1541 = vsel %vm1436, %v1515, 0
        %1543 = vmatpush.bf16.msra.mxu0 0
        %1544 = vmatpush.bf16.msra.mxu0 0
        %1545 = vmatpush.bf16.msra.mxu0 0
        %1546 = vmatpush.bf16.msra.mxu0 0
        %1547 = vmatpush.bf16.msra.mxu0 0
        %1548 = vmatpush.bf16.msra.mxu0 0
        %1549 = vmatpush.bf16.msra.mxu0 0
        %1550 = vmatpush.bf16.msra.mxu0 %v1541
        %1551 = vmatmul.bf16.gmra.mxu0 %v1538
        %v1552 = vpop.f32.mrf.mxu0
        %v1553 = vadd.f32 0.0, %v1552
        %v1554 = vpop.f32.mrf.mxu0
        %1555 = vdwg.mxu0
        %v1557 = vsel %vm1308, %v1512, 0
        %v1560 = vsel %vm1436, %v1516, 0
        %1562 = vmatpush.bf16.msra.mxu0 0
        %1563 = vmatpush.bf16.msra.mxu0 0
        %1564 = vmatpush.bf16.msra.mxu0 0
        %1565 = vmatpush.bf16.msra.mxu0 0
        %1566 = vmatpush.bf16.msra.mxu0 0
        %1567 = vmatpush.bf16.msra.mxu0 0
        %1568 = vmatpush.bf16.msra.mxu0 0
        %1569 = vmatpush.bf16.msra.mxu0 %v1560
        %1570 = vmatmul.bf16.gmra.mxu0 %v1557
        %v1571 = vpop.f32.mrf.mxu0
        %v1572 = vadd.f32 0.0, %v1571
        %v1573 = vpop.f32.mrf.mxu0
        %1574 = vdwg.mxu0
        %v1576 = vsel %vm1308, %v1513, 0
        %v1579 = vsel %vm1436, %v1517, 0
        %1581 = vmatpush.bf16.msra.mxu0 0
        %1582 = vmatpush.bf16.msra.mxu0 0
        %1583 = vmatpush.bf16.msra.mxu0 0
        %1584 = vmatpush.bf16.msra.mxu0 0
        %1585 = vmatpush.bf16.msra.mxu0 0
        %1586 = vmatpush.bf16.msra.mxu0 0
        %1587 = vmatpush.bf16.msra.mxu0 0
        %1588 = vmatpush.bf16.msra.mxu0 %v1579
        %1589 = vmatmul.bf16.gmra.mxu0 %v1576
        %v1590 = vpop.f32.mrf.mxu0
        %v1591 = vadd.f32 0.0, %v1590
        %v1592 = vpop.f32.mrf.mxu0
        %1593 = vdwg.mxu0
        %v1594 = vsel %vm976, %v1534, 0.0
        %v1595 = vsel %vm976, %v1553, 0.0
        %v1596 = vadd.f32 %v1594, %v1595
        %v1597 = vsel %vm976, %v1572, 0.0
        %v1598 = vadd.f32 %v1596, %v1597
        %v1599 = vsel %vm976, %v1591, 0.0
        %v1600 = vadd.f32 %v1598, %v1599
        %v1601 = vld [vmem:[%s812] sm:$0x1]
        %v1603 = vperm.slane %v1601, 0
        %v1605 = vadd.f32 %v1600, %v1603
        %v1606 = vadd.f32 %v1605, %v890
        %v1607 = vld [vmem:[%s815] sm:$0x1]
        %v1608 = vld [vmem:[%s818] sm:$0x1]
        %v1609 = vsel %vm976, %v1606, 0.0
        %1610 = vadd.xlane.f32.xlu0 %v1609
        %v1611 = vpop.xlane.xlu0 %1610
        %v1612 = vrcp.pop 32.0
        %v1613 = vmul.f32 32.0, %v1612
        %v1614 = vsub.f32 1.0, %v1613
        %v1615 = vmul.f32 %v1612, %v1614
        %v1616 = vadd.f32 %v1612, %v1615
        %vm1617 = vweird.f32 %v1612
        %v1618 = vsel %vm1617, %v1612, %v1616
        %v1619 = vmul.f32 %v1611, %v1618
        %v1620 = vmul.f32 %v1606, %v1606
        %v1621 = vsel %vm976, %v1620, 0.0
        %1622 = vadd.xlane.f32.xlu0 %v1621
        %v1623 = vpop.xlane.xlu0 %1622
        %v1624 = vmul.f32 %v1623, %v1618
        %v1625 = vsub.f32 %v1606, %v1619
        %v1626 = vmul.f32 %v1619, %v1619
        %v1627 = vsub.f32 %v1624, %v1626
        %v1628 = vadd.f32 %v1627, 1e-12
        %v1629 = vrsqrt.pop %v1628
        %v1630 = vmul.f32 %v1629, %v1628
        %v1631 = vmul.f32 %v1630, %v1629
        %v1632 = vmul.f32 0.5, %v1631
        %v1633 = vsub.f32 1.5, %v1632
        %v1634 = vmul.f32 %v1629, %v1633
        %vm1635 = vweird.f32 %v1628
        %vm1636 = vweird.f32 %v1629
        %vm1637 = vmor %vm1635, %vm1636
        %v1638 = vsel %vm1637, %v1629, %v1634
        %v1639 = vmul.f32 %v1625, %v1638
        %v1641 = vperm.slane %v1607, 0
        %v1643 = vmul.f32 %v1639, %v1641
        %v1645 = vperm.slane %v1608, 0
        %v1647 = vadd.f32 %v1643, %v1645
        %v1648 = vpack.c.bf16 %v1647, %v1647
        %v1649 = vld [vmem:[%s823] sm:$0xf]
        %v1650 = vld [vmem:[%s823 + $0x4] sm:$0xf]
        %v1651 = vld [vmem:[%s823 + $0x8] sm:$0xf]
        %v1652 = vld [vmem:[%s823 + $0xc] sm:$0xf]
        %v1653 = vld [vmem:[%s826] sm:$0x1]
        %v1655 = vperm.slane %v1653, 0
        %v1661 = vunpack.c.l.b16 %v1649
        %v1662 = vunpack.c.l.b16 %v1650
        %v1663 = vunpack.c.l.b16 %v1651
        %v1664 = vunpack.c.l.b16 %v1652
        %v1665 = vpack.c.b16 %v1662, %v1661
        %v1666 = vpack.c.b16 %v1664, %v1663
        %v1670 = vsel %vm976, %v1648, 0
        %1672 = vmatpush.bf16.msra.mxu0 0
        %1673 = vmatpush.bf16.msra.mxu0 0
        %1674 = vmatpush.bf16.msra.mxu0 0
        %1675 = vmatpush.bf16.msra.mxu0 0
        %1676 = vmatpush.bf16.msra.mxu0 0
        %1677 = vmatpush.bf16.msra.mxu0 0
        %1678 = vmatpush.bf16.msra.mxu0 %v1666
        %1679 = vmatpush.bf16.msra.mxu0 %v1665
        %1680 = vmatmul.bf16.gmra.mxu0 %v1670
        %v1681 = vpop.f32.mrf.mxu0
        %v1682 = vadd.f32 %v1655, %v1681
        %v1683 = vpop.f32.mrf.mxu0
        %1684 = vdwg.mxu0
        %v1685 = vmul.f32 %v1682, 0.5
        %v1686 = vmul.f32 %v1682, 0.70710677
        %v1687 = vmul.f32 %v1686, %v1686
        %v1688 = vmin.f32 16.0, %v1687
        %v1689 = vmul.f32 %v1688, 2.1237322e-06
        %v1690 = vadd.f32 %v1689, 0.00028619796
        %v1691 = vmul.f32 %v1688, %v1690
        %v1692 = vadd.f32 %v1691, 0.0036580483
        %v1693 = vmul.f32 %v1688, %v1692
        %v1694 = vadd.f32 %v1693, 0.05243302
        %v1695 = vmul.f32 %v1688, %v1694
        %v1696 = vadd.f32 %v1695, 0.18741608
        %v1697 = vmul.f32 %v1688, %v1696
        %v1698 = vadd.f32 %v1697, 1.1283791
        %v1699 = vmul.f32 %v1686, %v1698
        %v1700 = vmul.f32 %v1688, 3.8918573e-05
        %v1701 = vadd.f32 %v1700, 0.001143296
        %v1702 = vmul.f32 %v1688, %v1701
        %v1703 = vadd.f32 %v1702, 0.014752088
        %v1704 = vmul.f32 %v1688, %v1703
        %v1705 = vadd.f32 %v1704, 0.112945676
        %v1706 = vmul.f32 %v1688, %v1705
        %v1707 = vadd.f32 %v1706, 0.4994258
        %v1708 = vmul.f32 %v1688, %v1707
        %v1709 = vadd.f32 %v1708, 1.0
        %v1710 = vrcp.pop %v1709
        %v1711 = vmul.f32 %v1709, %v1710
        %v1712 = vsub.f32 1.0, %v1711
        %v1713 = vmul.f32 %v1710, %v1712
        %v1714 = vadd.f32 %v1710, %v1713
        %vm1715 = vweird.f32 %v1709
        %vm1716 = vweird.f32 %v1710
        %vm1717 = vmor %vm1715, %vm1716
        %v1718 = vsel %vm1717, %v1710, %v1714
        %v1719 = vand.u32 2147483647, %v1709
        %vm1720 = vcmp.eq.f32.partialorder %v1719, 8.507059e+37
        %v1721 = vand.u32 %v1709, 2147483648
        %v1722 = vor.u32 1.1754944e-38, %v1721
        %v1723 = vsel %vm1720, %v1722, %v1718
        %v1724 = vmul.f32 %v1699, %v1723
        %v1725 = vmin.f32 %v1724, 1.0
        %v1726 = vmax.f32 %v1725, -1.0
        %v1727 = vadd.f32 %v1726, 1.0
        %v1728 = vmul.f32 %v1685, %v1727
        %v1729 = vpack.c.bf16 %v1728, %v1728
        %v1730 = vld [vmem:[%s831] sm:$0xf]
        %v1731 = vld [vmem:[%s831 + $0x4] sm:$0xf]
        %v1732 = vld [vmem:[%s831 + $0x8] sm:$0xf]
        %v1733 = vld [vmem:[%s831 + $0xc] sm:$0xf]
        %v1734 = vld [vmem:[%s831 + $0x10] sm:$0xf]
        %v1735 = vld [vmem:[%s831 + $0x14] sm:$0xf]
        %v1736 = vld [vmem:[%s831 + $0x18] sm:$0xf]
        %v1737 = vld [vmem:[%s831 + $0x1c] sm:$0xf]
        %v1738 = vld [vmem:[%s834] sm:$0x1]
        %v1740 = vperm.slane %v1738, 0
        %v1750 = vunpack.c.l.b16 %v1730
        %v1751 = vunpack.c.l.b16 %v1731
        %v1752 = vunpack.c.l.b16 %v1732
        %v1753 = vunpack.c.l.b16 %v1733
        %v1754 = vunpack.c.l.b16 %v1734
        %v1755 = vunpack.c.l.b16 %v1735
        %v1756 = vunpack.c.l.b16 %v1736
        %v1757 = vunpack.c.l.b16 %v1737
        %v1758 = vpack.c.b16 %v1751, %v1750
        %v1759 = vpack.c.b16 %v1753, %v1752
        %v1760 = vpack.c.b16 %v1755, %v1754
        %v1761 = vpack.c.b16 %v1757, %v1756
        %vm1766 = vcmask 523264
        %v1768 = vsel %vm1766, %v1729, 0
        %1770 = vmatpush.bf16.msra.mxu0 0
        %1771 = vmatpush.bf16.msra.mxu0 0
        %1772 = vmatpush.bf16.msra.mxu0 0
        %1773 = vmatpush.bf16.msra.mxu0 0
        %1774 = vmatpush.bf16.msra.mxu0 %v1761
        %1775 = vmatpush.bf16.msra.mxu0 %v1760
        %1776 = vmatpush.bf16.msra.mxu0 %v1759
        %1777 = vmatpush.bf16.msra.mxu0 %v1758
        %1778 = vmatmul.bf16.gmra.mxu0 %v1768
        %v1779 = vpop.f32.mrf.mxu0
        %v1780 = vadd.f32 %v1740, %v1779
        %v1781 = vpop.f32.mrf.mxu0
        %1782 = vdwg.mxu0
        %v1783 = vadd.f32 %v1780, %v1647
        %v1784 = vld [vmem:[%s837] sm:$0x1]
        %v1785 = vld [vmem:[%s840] sm:$0x1]
        %v1786 = vsel %vm976, %v1783, 0.0
        %1787 = vadd.xlane.f32.xlu0 %v1786
        %v1788 = vpop.xlane.xlu0 %1787
        %v1789 = vmul.f32 %v1788, %v1618
        %v1790 = vmul.f32 %v1783, %v1783
        %v1791 = vsel %vm976, %v1790, 0.0
        %1792 = vadd.xlane.f32.xlu0 %v1791
        %v1793 = vpop.xlane.xlu0 %1792
        %v1794 = vmul.f32 %v1793, %v1618
        %v1795 = vsub.f32 %v1783, %v1789
        %v1796 = vmul.f32 %v1789, %v1789
        %v1797 = vsub.f32 %v1794, %v1796
        %v1798 = vadd.f32 %v1797, 1e-12
        %v1799 = vrsqrt.pop %v1798
        %v1800 = vmul.f32 %v1799, %v1798
        %v1801 = vmul.f32 %v1800, %v1799
        %v1802 = vmul.f32 0.5, %v1801
        %v1803 = vsub.f32 1.5, %v1802
        %v1804 = vmul.f32 %v1799, %v1803
        %vm1805 = vweird.f32 %v1798
        %vm1806 = vweird.f32 %v1799
        %vm1807 = vmor %vm1805, %vm1806
        %v1808 = vsel %vm1807, %v1799, %v1804
        %v1809 = vmul.f32 %v1795, %v1808
        %v1811 = vperm.slane %v1784, 0
        %v1813 = vmul.f32 %v1809, %v1811
        %v1815 = vperm.slane %v1785, 0
        %v1817 = vadd.f32 %v1813, %v1815
        %1818 = vst.msk [vmem:[#allocation2] sm:$0xff] %vm976, %v1817
        %p1819 = scmp.eq.s32.totalorder %s36, 1
        // Predicated region
        $region105: #{_forward_jit.1} parent=99 // pred_check
          %p1820 = pneg %p1819
        $region106: #{_forward_jit.1} parent=99 // pred_check_branch
          %1822 = sbr.rel (%p1820) target = $region108
        $region107: #{_forward_jit.1} parent=99 // pred_region
          %1823 = vst.msk [vmem:[#allocation3] sm:$0xff] %vm976, %v1817
          %v1824 = vpack.c.bf16 %v1817, %v1817
          %v1825 = vld [vmem:[%s16] sm:$0xf]
          %v1826 = vld [vmem:[%s16 + $0x4] sm:$0xf]
          %v1827 = vld [vmem:[%s16 + $0x8] sm:$0xf]
          %v1828 = vld [vmem:[%s16 + $0xc] sm:$0xf]
          %v1829 = vld [vmem:[%s17] sm:$0x1]
          %v1834 = vunpack.c.l.b16 %v1825
          %v1835 = vunpack.c.l.b16 %v1826
          %v1836 = vunpack.c.l.b16 %v1827
          %v1837 = vunpack.c.l.b16 %v1828
          %v1838 = vpack.c.b16 %v1835, %v1834
          %v1839 = vpack.c.b16 %v1837, %v1836
          %v1843 = vsel %vm976, %v1824, 0
          %1845 = vmatpush.bf16.msra.mxu0 0
          %1846 = vmatpush.bf16.msra.mxu0 0
          %1847 = vmatpush.bf16.msra.mxu0 0
          %1848 = vmatpush.bf16.msra.mxu0 0
          %1849 = vmatpush.bf16.msra.mxu0 0
          %1850 = vmatpush.bf16.msra.mxu0 0
          %1851 = vmatpush.bf16.msra.mxu0 %v1839
          %1852 = vmatpush.bf16.msra.mxu0 %v1838
          %1853 = vmatmul.bf16.gmra.mxu0 %v1843
          %v1854 = vpop.f32.mrf.mxu0
          %v1855 = vadd.f32 %v1829, %v1854
          %v1856 = vpop.f32.mrf.mxu0
          %1857 = vdwg.mxu0
          %v1858 = vtanh.pop %v1855
          %vm1859 = vcmask 253952
          %1860 = vst.msk [vmem:[#allocation5] sm:$0x1] %vm1859, %v1858
          %v1861 = vld [vmem:[%s18] sm:$0xf]
          %v1862 = vld [vmem:[%s18 + $0x4] sm:$0xf]
          %v1863 = vld [vmem:[%s18 + $0x8] sm:$0xf]
          %v1864 = vld [vmem:[%s18 + $0xc] sm:$0xf]
          %v1865 = vld [vmem:[%s19] sm:$0x1]
          %v1867 = vperm.slane %v1865, 0
          %v1873 = vunpack.c.l.b16 %v1861
          %v1874 = vunpack.c.l.b16 %v1862
          %v1875 = vunpack.c.l.b16 %v1863
          %v1876 = vunpack.c.l.b16 %v1864
          %v1877 = vpack.c.b16 %v1874, %v1873
          %v1878 = vpack.c.b16 %v1876, %v1875
          %1881 = vmatpush.bf16.msra.mxu0 0
          %1882 = vmatpush.bf16.msra.mxu0 0
          %1883 = vmatpush.bf16.msra.mxu0 0
          %1884 = vmatpush.bf16.msra.mxu0 0
          %1885 = vmatpush.bf16.msra.mxu0 0
          %1886 = vmatpush.bf16.msra.mxu0 0
          %1887 = vmatpush.bf16.msra.mxu0 %v1878
          %1888 = vmatpush.bf16.msra.mxu0 %v1877
          %1889 = vmatmul.bf16.gmra.mxu0 %v1843
          %v1890 = vpop.f32.mrf.mxu0
          %v1891 = vadd.f32 %v1867, %v1890
          %v1892 = vpop.f32.mrf.mxu0
          %1893 = vdwg.mxu0
          %v1894 = vrot.slane %v1891, 4
          %v1895 = vmax.f32 %v1891, %v1894
          %v1896 = vrot.slane %v1895, 2
          %v1897 = vmax.f32 %v1895, %v1896
          %v1898 = vrot.slane %v1897, 1
          %v1899 = vmax.f32 %v1897, %v1898
          %v1900 = vsub.f32 %v1891, %v1899
          %v1901 = vmul.f32 %v1900, 1.442695
          %v1902 = vpow.pop %v1901
          %v1903 = vrot.slane %v1902, 4
          %v1904 = vadd.f32 %v1902, %v1903
          %v1905 = vrot.slane %v1904, 2
          %v1906 = vadd.f32 %v1904, %v1905
          %v1907 = vrot.slane %v1906, 1
          %v1908 = vadd.f32 %v1906, %v1907
          %v1909 = vlog2.pop %v1908
          %v1910 = vmul.f32 %v1909, 0.6931472
          %v1911 = vsub.f32 %v1900, %v1910
          %1912 = vst [vmem:[%s22] sm:$0xff] %v1911
        $region108: #{_forward_jit.1} parent=99 // pred_fallthru
          _
        // Predicated region
        $region109: #{_forward_jit.1} parent=99 // pred_check
          %p1913 = pneg %p529
        $region110: #{_forward_jit.1} parent=99 // pred_check_branch
          %1915 = sbr.rel (%p1913) target = $region112
        $region111: #{_forward_jit.1} parent=99 // pred_region
          %1917 = vsyncadd [#allocation4], 0
          %s1919 = sshll.u32 [#allocation3], 4
          %s1920 = int_to_ptr.vmem [resolvable:$true] %s1919
          %s1921 = sshll.u32 %s20, 4
          %s1922 = int_to_ptr.hbm [resolvable:$true] %s1921
          %1924 = dma.vmem_to_hbm [thread:$0]  %s1920, 128, %s1922, [#allocation4]
        $region112: #{_forward_jit.1} parent=99 // pred_fallthru
          _
        // Predicated region
        $region113: #{_forward_jit.1} parent=99 // pred_check
          %p1925 = pneg %p550
        $region114: #{_forward_jit.1} parent=99 // pred_check_branch
          %1927 = sbr.rel (%p1925) target = $region116
        $region115: #{_forward_jit.1} parent=99 // pred_region
          %1929 = vsyncadd [#allocation6], 0
          %s1931 = sshll.u32 [#allocation5], 4
          %s1932 = int_to_ptr.vmem [resolvable:$true] %s1931
          %s1933 = sshll.u32 %s21, 4
          %s1934 = int_to_ptr.hbm [resolvable:$true] %s1933
          %1936 = dma.vmem_to_hbm [thread:$0]  %s1932, 16, %s1934, [#allocation6]
        $region116: #{_forward_jit.1} parent=99 // pred_fallthru
          _
        // Predicated region
        $region117: #{_forward_jit.1} parent=99 // pred_check
          %p1937 = pneg %p571
        $region118: #{_forward_jit.1} parent=99 // pred_check_branch
          %1939 = sbr.rel (%p1937) target = $region120
        $region119: #{_forward_jit.1} parent=99 // pred_region
          _
        $region120: #{_forward_jit.1} parent=99 // pred_fallthru
          _
        // Predicated region
        $region121: #{_forward_jit.1} parent=99 // pred_check
          %p1940 = pneg %p529
        $region122: #{_forward_jit.1} parent=99 // pred_check_branch
          %1942 = sbr.rel (%p1940) target = $region124
        $region123: #{_forward_jit.1} parent=99 // pred_region
          %1944 = dma.done [#allocation4], 128
        $region124: #{_forward_jit.1} parent=99 // pred_fallthru
          _
        // Predicated region
        $region125: #{_forward_jit.1} parent=99 // pred_check
          %p1945 = pneg %p550
        $region126: #{_forward_jit.1} parent=99 // pred_check_branch
          %1947 = sbr.rel (%p1945) target = $region128
        $region127: #{_forward_jit.1} parent=99 // pred_region
          %1949 = dma.done [#allocation6], 16
        $region128: #{_forward_jit.1} parent=99 // pred_fallthru
          _
        // Predicated region
        $region129: #{_forward_jit.1} parent=99 // pred_check
          %p1950 = pneg %p571
        $region130: #{_forward_jit.1} parent=99 // pred_check_branch
          %1952 = sbr.rel (%p1950) target = $region132
        $region131: #{_forward_jit.1} parent=99 // pred_region
          _
        $region132: #{_forward_jit.1} parent=99 // pred_fallthru
          _
      $region100: #{_forward_jit.1} parent=5 // pred_fallthru
        _
      %p1953 = scmp.le.s32.totalorder 2, %s31
      // Predicated region
      $region133: #{_forward_jit.1} parent=5 // pred_check
        %p1954 = pneg %p1953
      $region134: #{_forward_jit.1} parent=5 // pred_check_branch
        %1956 = sbr.rel (%p1954) target = $region136
      $region135: #{_forward_jit.1} parent=5 // pred_region
        %s1957 = ssub.s32 %s31, 2
      $region136: #{_forward_jit.1} parent=5 // pred_fallthru
        _
    $region6: #{_forward_jit.1} parent=1 // loop_footer
      %s35 = sadd.s32 1, %s31
    $region7: #{_forward_jit.1} parent=1 // loop_footer_branch
      %30 = sbr.rel target = $region3
    $region8: #{_forward_jit.1} parent=1 // loop_exit
      _
    %1958 = vsyncpa [#allocation4], 1
    %s1959 = scalar_lea.sflag [#allocation4], 1
    %1960 = vsyncpa %s1959, 1
    %1961 = vsyncpa [#allocation6], 1

</llo_original>
